<compile_context>
chip_gen: v5e
topology: v5e:2x2
jax: 0.10.0
libtpu: 0.0.40
codegen_flags: <defaults>
</compile_context>

<pallas_src>
import functools
import math

import jax
import jax.numpy as jnp
import numpy as np
from jax import lax
from jax.experimental import pallas as pl
from jax.experimental.pallas import tpu as pltpu


def _round_up(a, b):
    return (a + b - 1) // b * b


def _bilstm_kernel(xp_ref, w_ref, out_ref, hstate_ref, c_ref, *,
                   batch, hh, gsz, mxu_dtype):
    """Fused bidirectional LSTM recurrence over one time chunk."""
    tc, R, Kp = xp_ref.shape
    H = 2 * hh
    n_gates = 4 * hh                 # gate lanes per direction
    N = w_ref.shape[1]               # 8 * hh (both directions)

    # Zero the carried state only on the first time chunk.
    @pl.when(pl.program_id(0) == 0)
    def _init():
        hstate_ref[...] = jnp.zeros_like(hstate_ref)
        c_ref[...] = jnp.zeros_like(c_ref)

    # Hoisted loop invariants (JAX does not CSE broadcast/iota inside loops).
    w = w_ref[...]                                             # (Kp, N) bf16
    lane = lax.broadcasted_iota(jnp.int32, (R, N), 1)
    lm = lane % n_gates
    g_sel = ((lm >= 2 * hh) & (lm < 3 * hh)).astype(jnp.float32)  # tanh lanes
    row = lax.broadcasted_iota(jnp.int32, (R, N), 0)
    is_fwd_row = row < batch

    n_groups = tc // gsz

    def group(gi, carry):
        base = gi * gsz
        h_slices = []
        # Static inner unroll: lane offsets / list indices are Python ints, so
        # the output packing below uses only static lane placement.
        for j in range(gsz):
            t = base + j
            # hstate holds h (both directions) at lanes [H, H+hh) and zeros
            # elsewhere; xp has x at lanes [0, H), the ones column at lane
            # H+hh and zeros in the h slot, so one VPU add builds the fused
            # matmul operand.
            m = xp_ref[t] + hstate_ref[...]                    # (R, Kp) f32

            # One full-lane-width bf16 MXU matmul per step (f32 accumulate):
            # both directions, input + hidden contributions and biases fused.
            z = jnp.dot(m.astype(mxu_dtype), w,
                        preferred_element_type=jnp.float32)    # (R, N) f32

            # Single sigmoid over the whole gate block; g columns were
            # pre-scaled by 2 in the wrapper, so tanh(x) = 2*sigmoid(2x) - 1
            # on the g lanes:  act = s + g_sel * (s - 1).
            s = jax.nn.sigmoid(z)
            act = s + g_sel * (s - 1.0)

            # Align backward gates (rows B:2B, lanes 4hh:8hh) onto the forward
            # gate lanes with one XLU rotation + select.
            rolled = pltpu.roll(act, shift=n_gates, axis=1)
            gates = jnp.where(is_fwd_row, act, rolled)[:, :n_gates]  # (R, 4hh)

            i_g = gates[:, 0 * hh:1 * hh]
            f_g = gates[:, 1 * hh:2 * hh]
            g_g = gates[:, 2 * hh:3 * hh]
            o_g = gates[:, 3 * hh:4 * hh]

            c_new = f_g * c_ref[...] + i_g * g_g               # f32 cell math
            h_new = o_g * jnp.tanh(c_new)

            c_ref[...] = c_new
            hstate_ref[:, H:H + hh] = h_new                    # matmul h slot
            h_slices.append(h_new)

        # One lane-dense (R, gsz*hh) store per group of gsz timesteps.
        if gsz > 1:
            out_ref[gi] = jnp.concatenate(h_slices, axis=-1)
        else:
            out_ref[gi] = h_slices[0]
        return carry

    lax.fori_loop(0, n_groups, group, 0, unroll=True if n_groups <= 8 else 1)


def bilstm_forward(x, params, *, t_chunk=None, mxu_dtype=jnp.bfloat16):
    """Mirrors BiLSTM.forward: returns (output, (1, 1)).

    x: (B, T, H) float32, batch-first.  output[..., :H//2] is the forward LSTM,
    output[..., H//2:] is the backward LSTM run over the time-flipped input
    (not re-flipped), exactly matching torch.cat((out1, out2), 2).
    """
    B, T, H = x.shape
    Hh = H // 2
    assert 2 * Hh == H
    wih_f, whh_f, bih_f, bhh_f, wih_b, whh_b, bih_b, bhh_b = params

    R = _round_up(2 * B, 8)              # sublane-padded fused row count
    Kp = _round_up(H + Hh + 1, 128)      # lane-padded contraction dim (x|h|1)
    N = 8 * Hh                           # gate lanes, both directions

    # Output lane grouping: pack gsz consecutive timesteps per 128-lane row.
    gsz = (128 // Hh) if (Hh <= 128 and 128 % Hh == 0) else 1
    Wout = gsz * Hh

    # t_chunk defaults to the (padded) full sequence, capped at 1024 steps:
    # double-buffered chunk traffic stays < ~10 MiB, under the v5e 16 MiB /
    # v7x 32 MiB scoped VMEM defaults, so no vmem_limit_bytes override needed.
    if t_chunk is None:
        tc = min(_round_up(max(T, 1), gsz), 1024)
    else:
        tc = t_chunk
        assert tc % gsz == 0, "t_chunk must be a multiple of the output group"
    T_pad = _round_up(T, tc)             # trailing padded steps are discarded
    nT = T_pad // tc

    # ---- fused weight (Kp, 8*Hh): [[Wih],[Whh],[b_ih+b_hh]] per direction,
    # directions stacked along output lanes, g-gate columns pre-scaled by 2,
    # stored in the MXU dtype (bf16).
    def stack_dir(wih, whh, bih, bhh):
        return jnp.concatenate([wih.T, whh.T, (bih + bhh)[None, :]], axis=0)

    w = jnp.concatenate([stack_dir(wih_f, whh_f, bih_f, bhh_f),
                         stack_dir(wih_b, whh_b, bih_b, bhh_b)], axis=1)
    col = jnp.arange(N)
    g_col = (col % (4 * Hh) >= 2 * Hh) & (col % (4 * Hh) < 3 * Hh)
    w = w * jnp.where(g_col, 2.0, 1.0)[None, :].astype(w.dtype)
    w = jnp.pad(w, ((0, Kp - (H + Hh + 1)), (0, 0)))             # (Kp, N)
    w = w.astype(mxu_dtype)

    # ---- time-major, direction-stacked, lane-padded input:
    #   xp[t] rows 0:B  = [x[:, t    ] | 0(h slot) | 1 | 0pad]   (forward)
    #   xp[t] rows B:2B = [x[:, T-1-t] | 0(h slot) | 1 | 0pad]   (backward)
    #   xp[t] rows 2B:R = 0, and xp[t >= T] = 0 (trailing time pad, discarded)
    x_tm = jnp.swapaxes(x, 0, 1)                                 # (T, B, H)
    xx = jnp.concatenate([x_tm, x_tm[::-1]], axis=1)             # (T, 2B, H)
    xp = jnp.concatenate(
        [xx,
         jnp.zeros((T, 2 * B, Hh), x.dtype),                     # h slot
         jnp.ones((T, 2 * B, 1), x.dtype),                       # bias selector
         jnp.zeros((T, 2 * B, Kp - (H + Hh + 1)), x.dtype)],     # lane pad
        axis=-1)                                                 # (T, 2B, Kp)
    xp = jnp.pad(xp, ((0, T_pad - T), (0, R - 2 * B), (0, 0)))   # (T_pad, R, Kp)

    kernel = functools.partial(_bilstm_kernel, batch=B, hh=Hh, gsz=gsz,
                               mxu_dtype=mxu_dtype)

    out_pack = pl.pallas_call(
        kernel,
        out_shape=jax.ShapeDtypeStruct((T_pad // gsz, R, Wout), jnp.float32),
        grid_spec=pltpu.PrefetchScalarGridSpec(
            num_scalar_prefetch=0,
            grid=(nT,),
            in_specs=[
                pl.BlockSpec((tc, R, Kp), lambda i: (i, 0, 0)),   # x time-chunk
                pl.BlockSpec((Kp, N), lambda i: (0, 0)),          # fused weights
            ],
            out_specs=pl.BlockSpec((tc // gsz, R, Wout), lambda i: (i, 0, 0)),
            scratch_shapes=[
                pltpu.VMEM((R, Kp), jnp.float32),  # h (both dirs), matmul slot
                pltpu.VMEM((R, Hh), jnp.float32),  # c (both dirs)
            ],
        ),
        compiler_params=pltpu.CompilerParams(
            # The time-chunk axis is a sequential recurrence (state carried in
            # scratch).  A v7x-only 2-TC direction split would need a leading
            # "parallel" axis and per-generation gating; not enabled here.
            dimension_semantics=("arbitrary",),
        ),
    )(xp, w)

    # ---- wrapper-side layout plumbing: (T_pad//gsz, R, gsz*Hh) -> (B, T, H)
    out_pack = out_pack.reshape(T_pad // gsz, R, gsz, Hh)
    out_pack = jnp.transpose(out_pack, (0, 2, 1, 3)).reshape(T_pad, R, Hh)
    out = jnp.concatenate([out_pack[:T, :B, :], out_pack[:T, B:2 * B, :]],
                          axis=-1)
    out = jnp.swapaxes(out, 0, 1)
    return out, (1, 1)


# -------- deterministic parameter init (PyTorch nn.LSTM default: U(-k, k), k=1/sqrt(Hh))
def init_params(key, hidden_size):
    Hh = hidden_size // 2
    k = 1.0 / math.sqrt(Hh)
    shapes = [
        (4 * Hh, hidden_size), (4 * Hh, Hh), (4 * Hh,), (4 * Hh,),  # forward lstm
        (4 * Hh, hidden_size), (4 * Hh, Hh), (4 * Hh,), (4 * Hh,),  # backward lstm
    ]
    keys = jax.random.split(key, len(shapes))
    return tuple(
        jax.random.uniform(kk, s, jnp.float32, minval=-k, maxval=k)
        for kk, s in zip(keys, shapes)
    )


# -------- pure-JAX reference (for correctness check)
def _lstm_ref(x, wih, whh, bih, bhh):
    B, T, H = x.shape
    Hh = wih.shape[0] // 4

    def cell(carry, x_t):
        h, c = carry
        gates = x_t @ wih.T + h @ whh.T + bih + bhh
        i, f, g, o = jnp.split(gates, 4, axis=-1)
        i = jax.nn.sigmoid(i)
        f = jax.nn.sigmoid(f)
        g = jnp.tanh(g)
        o = jax.nn.sigmoid(o)
        c = f * c + i * g
        h = o * jnp.tanh(c)
        return (h, c), h

    init = (jnp.zeros((B, Hh), jnp.float32), jnp.zeros((B, Hh), jnp.float32))
    _, hs = lax.scan(cell, init, jnp.swapaxes(x, 0, 1))
    return jnp.swapaxes(hs, 0, 1)


def bilstm_ref(x, params):
    wih_f, whh_f, bih_f, bhh_f, wih_b, whh_b, bih_b, bhh_b = params
    out1 = _lstm_ref(x, wih_f, whh_f, bih_f, bhh_f)
    out2 = _lstm_ref(x[:, ::-1, :], wih_b, whh_b, bih_b, bhh_b)
    return jnp.concatenate([out1, out2], axis=-1)


if __name__ == "__main__":
    B, T, H = 2, 16, 32  # batch, seq len, hidden_size (Hh = 16 per direction)
    key = jax.random.PRNGKey(0)
    kx, kp = jax.random.split(key)
    x = jax.random.normal(kx, (B, T, H), jnp.float32)
    params = init_params(kp, H)

    ref = jax.block_until_ready(bilstm_ref(x, params))

    # Run twice: default chunking (full sequence, one grid step) and explicit
    # t_chunk=8 (two sequential grid steps; exercises the carried-state path).
    # Tolerance is bf16-matmul level; cell math stays f32.
    for tck in (None, 8):
        out, extra = bilstm_forward(x, params, t_chunk=tck)
        out = jax.block_until_ready(out)
        np.testing.assert_allclose(np.asarray(out), np.asarray(ref),
                                   rtol=2e-2, atol=2e-2)
        assert out.shape == (B, T, H)
        assert extra == (1, 1)
    print("KERNEL_OK")
</pallas_src>

<mosaic_0001>
module attributes {stable_mosaic.version = 11 : i64} {
  func.func @_bilstm_kernel(%arg0: i32, %arg1: memref<16x8x128xf32, #tpu.memory_space<vmem>>, %arg2: memref<128x128xbf16, #tpu.memory_space<vmem>>, %arg3: memref<2x8x128xf32, #tpu.memory_space<vmem>>, %arg4: memref<8x128xf32, #tpu.memory_space<vmem>>, %arg5: memref<8x16xf32, #tpu.memory_space<vmem>>) attributes {dimension_semantics = [#tpu.dimension_semantics<arbitrary>], iteration_bounds = array<i64: 1>, scalar_prefetch = 0 : i64, scratch_operands = 2 : i64, tpu.core_type = #tpu.core_type<tc>, window_params = [{transform_indices = @transform_0, window_bounds = array<i64: 16, 8, 128>}, {pipeline_mode = #tpu.pipeline_mode<synchronous>, transform_indices = @transform_1, window_bounds = array<i64: 128, 128>}, {transform_indices = @transform_2, window_bounds = array<i64: 2, 8, 128>}]} {
    %c0_i32 = arith.constant 0 : i32
    %0 = arith.cmpi eq, %arg0, %c0_i32 : i32
    %1 = arith.extui %0 : i1 to i32
    %c0_i32_0 = arith.constant 0 : i32
    %2 = arith.cmpi ne, %1, %c0_i32_0 : i32
    scf.if %2 {
      %cst_247 = arith.constant 0.000000e+00 : f32
      %555 = vector.broadcast %cst_247 : f32 to vector<8x128xf32>
      %c0_248 = arith.constant 0 : index
      %c0_249 = arith.constant 0 : index
      %556 = vector.load %arg4[%c0_248, %c0_249] : memref<8x128xf32, #tpu.memory_space<vmem>>, vector<8x128xf32>
      tpu.vector_store %arg4[%c0_248, %c0_249], %555 {strides = array<i32>} : memref<8x128xf32, #tpu.memory_space<vmem>>, vector<8x128xf32>,
      %cst_250 = arith.constant 0.000000e+00 : f32
      %557 = vector.broadcast %cst_250 : f32 to vector<8x16xf32>
      %c0_251 = arith.constant 0 : index
      %c0_252 = arith.constant 0 : index
      %558 = vector.load %arg5[%c0_251, %c0_252] : memref<8x16xf32, #tpu.memory_space<vmem>>, vector<8x16xf32>
      tpu.vector_store %arg5[%c0_251, %c0_252], %557 {strides = array<i32>} : memref<8x16xf32, #tpu.memory_space<vmem>>, vector<8x16xf32>,
    } else {
    }
    %c0 = arith.constant 0 : index
    %c0_1 = arith.constant 0 : index
    %3 = vector.load %arg2[%c0, %c0_1] : memref<128x128xbf16, #tpu.memory_space<vmem>>, vector<128x128xbf16>
    %4 = tpu.iota {dimensions = array<i32: 1>} : vector<8x128xi32>
    %c64_i32 = arith.constant 64 : i32
    %c0_i32_2 = arith.constant 0 : i32
    %5 = arith.cmpi eq, %c64_i32, %c0_i32_2 : i32
    %c1_i32 = arith.constant 1 : i32
    %6 = arith.select %5, %c1_i32, %c64_i32 : i32
    %7 = vector.broadcast %6 : i32 to vector<8x128xi32>
    %8 = arith.remsi %4, %7 : vector<8x128xi32>
    %c0_i32_3 = arith.constant 0 : i32
    %9 = vector.broadcast %c0_i32_3 : i32 to vector<8x128xi32>
    %10 = arith.cmpi ne, %8, %9 : vector<8x128xi32>
    %c0_i32_4 = arith.constant 0 : i32
    %11 = vector.broadcast %c0_i32_4 : i32 to vector<8x128xi32>
    %12 = arith.cmpi slt, %8, %11 : vector<8x128xi32>
    %c0_i32_5 = arith.constant 0 : i32
    %13 = arith.cmpi slt, %6, %c0_i32_5 : i32
    %14 = vector.broadcast %13 : i1 to vector<8x128xi1>
    %15 = vector.broadcast %14 : vector<8x128xi1> to vector<8x128xi1>
    %16 = arith.xori %12, %15 : vector<8x128xi1>
    %17 = arith.andi %16, %10 : vector<8x128xi1>
    %18 = vector.broadcast %6 : i32 to vector<8x128xi32>
    %19 = arith.addi %8, %18 : vector<8x128xi32>
    %20 = arith.select %17, %19, %8 : vector<8x128xi1>, vector<8x128xi32>
    %c32_i32 = arith.constant 32 : i32
    %21 = vector.broadcast %c32_i32 : i32 to vector<8x128xi32>
    %22 = arith.cmpi sge, %20, %21 : vector<8x128xi32>
    %c48_i32 = arith.constant 48 : i32
    %23 = vector.broadcast %c48_i32 : i32 to vector<8x128xi32>
    %24 = arith.cmpi slt, %20, %23 : vector<8x128xi32>
    %25 = arith.andi %22, %24 : vector<8x128xi1>
    %26 = arith.extui %25 : vector<8x128xi1> to vector<8x128xi32>
    %27 = arith.sitofp %26 : vector<8x128xi32> to vector<8x128xf32>
    %28 = tpu.iota {dimensions = array<i32: 0>} : vector<8x128xi32>
    %c2_i32 = arith.constant 2 : i32
    %29 = vector.broadcast %c2_i32 : i32 to vector<8x128xi32>
    %30 = arith.cmpi slt, %28, %29 : vector<8x128xi32>
    %c0_i32_6 = arith.constant 0 : i32
    %c8_i32 = arith.constant 8 : i32
    %31 = arith.muli %c0_i32_6, %c8_i32 : i32
    %c0_i32_7 = arith.constant 0 : i32
    %32 = arith.addi %31, %c0_i32_7 : i32
    %33 = arith.index_cast %32 : i32 to index
    %c0_8 = arith.constant 0 : index
    %c0_9 = arith.constant 0 : index
    %34 = vector.load %arg1[%33, %c0_8, %c0_9] : memref<16x8x128xf32, #tpu.memory_space<vmem>>, vector<1x8x128xf32>
    %35 = vector.shape_cast %34 : vector<1x8x128xf32> to vector<8x128xf32>
    %c0_10 = arith.constant 0 : index
    %c0_11 = arith.constant 0 : index
    %36 = vector.load %arg4[%c0_10, %c0_11] : memref<8x128xf32, #tpu.memory_space<vmem>>, vector<8x128xf32>
    %37 = arith.addf %35, %36 : vector<8x128xf32>
    %38 = arith.truncf %37 : vector<8x128xf32> to vector<8x128xbf16>
    %cst = arith.constant dense<0.000000e+00> : vector<8x128xf32>
    %39 = tpu.matmul %38, %3, %cst {dimension_numbers = #tpu.dot_dimension_numbers<[1], [0], [0], [1], [0, 0, 1, 1], [], []>} : vector<8x128xbf16>, vector<128x128xbf16>, vector<8x128xf32> -> vector<8x128xf32>
    %40 = arith.negf %39 : vector<8x128xf32>
    %41 = math.exp %40 : vector<8x128xf32>
    %cst_12 = arith.constant 1.000000e+00 : f32
    %42 = vector.broadcast %cst_12 : f32 to vector<8x128xf32>
    %43 = arith.addf %42, %41 : vector<8x128xf32>
    %44 = arith.divf %42, %43 : vector<8x128xf32>
    %cst_13 = arith.constant 1.000000e+00 : f32
    %45 = vector.broadcast %cst_13 : f32 to vector<8x128xf32>
    %46 = arith.subf %44, %45 : vector<8x128xf32>
    %47 = arith.mulf %27, %46 : vector<8x128xf32>
    %48 = arith.addf %44, %47 : vector<8x128xf32>
    %c64_i32_14 = arith.constant 64 : i32
    %49 = tpu.dynamic_rotate %48 by %c64_i32_14 dim 1 : vector<8x128xf32>, i32 -> vector<8x128xf32>
    %50 = arith.select %30, %48, %49 : vector<8x128xi1>, vector<8x128xf32>
    %51 = vector.extract_strided_slice %50 {offsets = [0, 0], sizes = [8, 64], strides = [1, 1]} : vector<8x128xf32> to vector<8x64xf32>
    %52 = vector.extract_strided_slice %51 {offsets = [0, 0], sizes = [8, 16], strides = [1, 1]} : vector<8x64xf32> to vector<8x16xf32>
    %53 = vector.extract_strided_slice %51 {offsets = [0, 16], sizes = [8, 16], strides = [1, 1]} : vector<8x64xf32> to vector<8x16xf32>
    %54 = vector.extract_strided_slice %51 {offsets = [0, 32], sizes = [8, 16], strides = [1, 1]} : vector<8x64xf32> to vector<8x16xf32>
    %55 = vector.extract_strided_slice %51 {offsets = [0, 48], sizes = [8, 16], strides = [1, 1]} : vector<8x64xf32> to vector<8x16xf32>
    %c0_15 = arith.constant 0 : index
    %c0_16 = arith.constant 0 : index
    %56 = vector.load %arg5[%c0_15, %c0_16] : memref<8x16xf32, #tpu.memory_space<vmem>>, vector<8x16xf32>
    %57 = arith.mulf %53, %56 : vector<8x16xf32>
    %58 = arith.mulf %52, %54 : vector<8x16xf32>
    %59 = arith.addf %57, %58 : vector<8x16xf32>
    %60 = math.tanh %59 : vector<8x16xf32>
    %61 = arith.mulf %55, %60 : vector<8x16xf32>
    %c0_17 = arith.constant 0 : index
    %c0_18 = arith.constant 0 : index
    %62 = vector.load %arg5[%c0_17, %c0_18] : memref<8x16xf32, #tpu.memory_space<vmem>>, vector<8x16xf32>
    tpu.vector_store %arg5[%c0_17, %c0_18], %59 {strides = array<i32>} : memref<8x16xf32, #tpu.memory_space<vmem>>, vector<8x16xf32>,
    %c0_19 = arith.constant 0 : index
    %c32 = arith.constant 32 : index
    %63 = vector.load %arg4[%c0_19, %c32] : memref<8x128xf32, #tpu.memory_space<vmem>>, vector<8x16xf32>
    tpu.vector_store %arg4[%c0_19, %c32], %61 {strides = array<i32>} : memref<8x128xf32, #tpu.memory_space<vmem>>, vector<8x16xf32>,
    %c1_i32_20 = arith.constant 1 : i32
    %64 = arith.addi %31, %c1_i32_20 : i32
    %65 = arith.index_cast %64 : i32 to index
    %c0_21 = arith.constant 0 : index
    %c0_22 = arith.constant 0 : index
    %66 = vector.load %arg1[%65, %c0_21, %c0_22] : memref<16x8x128xf32, #tpu.memory_space<vmem>>, vector<1x8x128xf32>
    %67 = vector.shape_cast %66 : vector<1x8x128xf32> to vector<8x128xf32>
    %c0_23 = arith.constant 0 : index
    %c0_24 = arith.constant 0 : index
    %68 = vector.load %arg4[%c0_23, %c0_24] : memref<8x128xf32, #tpu.memory_space<vmem>>, vector<8x128xf32>
    %69 = arith.addf %67, %68 : vector<8x128xf32>
    %70 = arith.truncf %69 : vector<8x128xf32> to vector<8x128xbf16>
    %cst_25 = arith.constant dense<0.000000e+00> : vector<8x128xf32>
    %71 = tpu.matmul %70, %3, %cst_25 {dimension_numbers = #tpu.dot_dimension_numbers<[1], [0], [0], [1], [0, 0, 1, 1], [], []>} : vector<8x128xbf16>, vector<128x128xbf16>, vector<8x128xf32> -> vector<8x128xf32>
    %72 = arith.negf %71 : vector<8x128xf32>
    %73 = math.exp %72 : vector<8x128xf32>
    %cst_26 = arith.constant 1.000000e+00 : f32
    %74 = vector.broadcast %cst_26 : f32 to vector<8x128xf32>
    %75 = arith.addf %74, %73 : vector<8x128xf32>
    %76 = arith.divf %74, %75 : vector<8x128xf32>
    %cst_27 = arith.constant 1.000000e+00 : f32
    %77 = vector.broadcast %cst_27 : f32 to vector<8x128xf32>
    %78 = arith.subf %76, %77 : vector<8x128xf32>
    %79 = arith.mulf %27, %78 : vector<8x128xf32>
    %80 = arith.addf %76, %79 : vector<8x128xf32>
    %c64_i32_28 = arith.constant 64 : i32
    %81 = tpu.dynamic_rotate %80 by %c64_i32_28 dim 1 : vector<8x128xf32>, i32 -> vector<8x128xf32>
    %82 = arith.select %30, %80, %81 : vector<8x128xi1>, vector<8x128xf32>
    %83 = vector.extract_strided_slice %82 {offsets = [0, 0], sizes = [8, 64], strides = [1, 1]} : vector<8x128xf32> to vector<8x64xf32>
    %84 = vector.extract_strided_slice %83 {offsets = [0, 0], sizes = [8, 16], strides = [1, 1]} : vector<8x64xf32> to vector<8x16xf32>
    %85 = vector.extract_strided_slice %83 {offsets = [0, 16], sizes = [8, 16], strides = [1, 1]} : vector<8x64xf32> to vector<8x16xf32>
    %86 = vector.extract_strided_slice %83 {offsets = [0, 32], sizes = [8, 16], strides = [1, 1]} : vector<8x64xf32> to vector<8x16xf32>
    %87 = vector.extract_strided_slice %83 {offsets = [0, 48], sizes = [8, 16], strides = [1, 1]} : vector<8x64xf32> to vector<8x16xf32>
    %c0_29 = arith.constant 0 : index
    %c0_30 = arith.constant 0 : index
    %88 = vector.load %arg5[%c0_29, %c0_30] : memref<8x16xf32, #tpu.memory_space<vmem>>, vector<8x16xf32>
    %89 = arith.mulf %85, %88 : vector<8x16xf32>
    %90 = arith.mulf %84, %86 : vector<8x16xf32>
    %91 = arith.addf %89, %90 : vector<8x16xf32>
    %92 = math.tanh %91 : vector<8x16xf32>
    %93 = arith.mulf %87, %92 : vector<8x16xf32>
    %c0_31 = arith.constant 0 : index
    %c0_32 = arith.constant 0 : index
    %94 = vector.load %arg5[%c0_31, %c0_32] : memref<8x16xf32, #tpu.memory_space<vmem>>, vector<8x16xf32>
    tpu.vector_store %arg5[%c0_31, %c0_32], %91 {strides = array<i32>} : memref<8x16xf32, #tpu.memory_space<vmem>>, vector<8x16xf32>,
    %c0_33 = arith.constant 0 : index
    %c32_34 = arith.constant 32 : index
    %95 = vector.load %arg4[%c0_33, %c32_34] : memref<8x128xf32, #tpu.memory_space<vmem>>, vector<8x16xf32>
    tpu.vector_store %arg4[%c0_33, %c32_34], %93 {strides = array<i32>} : memref<8x128xf32, #tpu.memory_space<vmem>>, vector<8x16xf32>,
    %c2_i32_35 = arith.constant 2 : i32
    %96 = arith.addi %31, %c2_i32_35 : i32
    %97 = arith.index_cast %96 : i32 to index
    %c0_36 = arith.constant 0 : index
    %c0_37 = arith.constant 0 : index
    %98 = vector.load %arg1[%97, %c0_36, %c0_37] : memref<16x8x128xf32, #tpu.memory_space<vmem>>, vector<1x8x128xf32>
    %99 = vector.shape_cast %98 : vector<1x8x128xf32> to vector<8x128xf32>
    %c0_38 = arith.constant 0 : index
    %c0_39 = arith.constant 0 : index
    %100 = vector.load %arg4[%c0_38, %c0_39] : memref<8x128xf32, #tpu.memory_space<vmem>>, vector<8x128xf32>
    %101 = arith.addf %99, %100 : vector<8x128xf32>
    %102 = arith.truncf %101 : vector<8x128xf32> to vector<8x128xbf16>
    %cst_40 = arith.constant dense<0.000000e+00> : vector<8x128xf32>
    %103 = tpu.matmul %102, %3, %cst_40 {dimension_numbers = #tpu.dot_dimension_numbers<[1], [0], [0], [1], [0, 0, 1, 1], [], []>} : vector<8x128xbf16>, vector<128x128xbf16>, vector<8x128xf32> -> vector<8x128xf32>
    %104 = arith.negf %103 : vector<8x128xf32>
    %105 = math.exp %104 : vector<8x128xf32>
    %cst_41 = arith.constant 1.000000e+00 : f32
    %106 = vector.broadcast %cst_41 : f32 to vector<8x128xf32>
    %107 = arith.addf %106, %105 : vector<8x128xf32>
    %108 = arith.divf %106, %107 : vector<8x128xf32>
    %cst_42 = arith.constant 1.000000e+00 : f32
    %109 = vector.broadcast %cst_42 : f32 to vector<8x128xf32>
    %110 = arith.subf %108, %109 : vector<8x128xf32>
    %111 = arith.mulf %27, %110 : vector<8x128xf32>
    %112 = arith.addf %108, %111 : vector<8x128xf32>
    %c64_i32_43 = arith.constant 64 : i32
    %113 = tpu.dynamic_rotate %112 by %c64_i32_43 dim 1 : vector<8x128xf32>, i32 -> vector<8x128xf32>
    %114 = arith.select %30, %112, %113 : vector<8x128xi1>, vector<8x128xf32>
    %115 = vector.extract_strided_slice %114 {offsets = [0, 0], sizes = [8, 64], strides = [1, 1]} : vector<8x128xf32> to vector<8x64xf32>
    %116 = vector.extract_strided_slice %115 {offsets = [0, 0], sizes = [8, 16], strides = [1, 1]} : vector<8x64xf32> to vector<8x16xf32>
    %117 = vector.extract_strided_slice %115 {offsets = [0, 16], sizes = [8, 16], strides = [1, 1]} : vector<8x64xf32> to vector<8x16xf32>
    %118 = vector.extract_strided_slice %115 {offsets = [0, 32], sizes = [8, 16], strides = [1, 1]} : vector<8x64xf32> to vector<8x16xf32>
    %119 = vector.extract_strided_slice %115 {offsets = [0, 48], sizes = [8, 16], strides = [1, 1]} : vector<8x64xf32> to vector<8x16xf32>
    %c0_44 = arith.constant 0 : index
    %c0_45 = arith.constant 0 : index
    %120 = vector.load %arg5[%c0_44, %c0_45] : memref<8x16xf32, #tpu.memory_space<vmem>>, vector<8x16xf32>
    %121 = arith.mulf %117, %120 : vector<8x16xf32>
    %122 = arith.mulf %116, %118 : vector<8x16xf32>
    %123 = arith.addf %121, %122 : vector<8x16xf32>
    %124 = math.tanh %123 : vector<8x16xf32>
    %125 = arith.mulf %119, %124 : vector<8x16xf32>
    %c0_46 = arith.constant 0 : index
    %c0_47 = arith.constant 0 : index
    %126 = vector.load %arg5[%c0_46, %c0_47] : memref<8x16xf32, #tpu.memory_space<vmem>>, vector<8x16xf32>
    tpu.vector_store %arg5[%c0_46, %c0_47], %123 {strides = array<i32>} : memref<8x16xf32, #tpu.memory_space<vmem>>, vector<8x16xf32>,
    %c0_48 = arith.constant 0 : index
    %c32_49 = arith.constant 32 : index
    %127 = vector.load %arg4[%c0_48, %c32_49] : memref<8x128xf32, #tpu.memory_space<vmem>>, vector<8x16xf32>
    tpu.vector_store %arg4[%c0_48, %c32_49], %125 {strides = array<i32>} : memref<8x128xf32, #tpu.memory_space<vmem>>, vector<8x16xf32>,
    %c3_i32 = arith.constant 3 : i32
    %128 = arith.addi %31, %c3_i32 : i32
    %129 = arith.index_cast %128 : i32 to index
    %c0_50 = arith.constant 0 : index
    %c0_51 = arith.constant 0 : index
    %130 = vector.load %arg1[%129, %c0_50, %c0_51] : memref<16x8x128xf32, #tpu.memory_space<vmem>>, vector<1x8x128xf32>
    %131 = vector.shape_cast %130 : vector<1x8x128xf32> to vector<8x128xf32>
    %c0_52 = arith.constant 0 : index
    %c0_53 = arith.constant 0 : index
    %132 = vector.load %arg4[%c0_52, %c0_53] : memref<8x128xf32, #tpu.memory_space<vmem>>, vector<8x128xf32>
    %133 = arith.addf %131, %132 : vector<8x128xf32>
    %134 = arith.truncf %133 : vector<8x128xf32> to vector<8x128xbf16>
    %cst_54 = arith.constant dense<0.000000e+00> : vector<8x128xf32>
    %135 = tpu.matmul %134, %3, %cst_54 {dimension_numbers = #tpu.dot_dimension_numbers<[1], [0], [0], [1], [0, 0, 1, 1], [], []>} : vector<8x128xbf16>, vector<128x128xbf16>, vector<8x128xf32> -> vector<8x128xf32>
    %136 = arith.negf %135 : vector<8x128xf32>
    %137 = math.exp %136 : vector<8x128xf32>
    %cst_55 = arith.constant 1.000000e+00 : f32
    %138 = vector.broadcast %cst_55 : f32 to vector<8x128xf32>
    %139 = arith.addf %138, %137 : vector<8x128xf32>
    %140 = arith.divf %138, %139 : vector<8x128xf32>
    %cst_56 = arith.constant 1.000000e+00 : f32
    %141 = vector.broadcast %cst_56 : f32 to vector<8x128xf32>
    %142 = arith.subf %140, %141 : vector<8x128xf32>
    %143 = arith.mulf %27, %142 : vector<8x128xf32>
    %144 = arith.addf %140, %143 : vector<8x128xf32>
    %c64_i32_57 = arith.constant 64 : i32
    %145 = tpu.dynamic_rotate %144 by %c64_i32_57 dim 1 : vector<8x128xf32>, i32 -> vector<8x128xf32>
    %146 = arith.select %30, %144, %145 : vector<8x128xi1>, vector<8x128xf32>
    %147 = vector.extract_strided_slice %146 {offsets = [0, 0], sizes = [8, 64], strides = [1, 1]} : vector<8x128xf32> to vector<8x64xf32>
    %148 = vector.extract_strided_slice %147 {offsets = [0, 0], sizes = [8, 16], strides = [1, 1]} : vector<8x64xf32> to vector<8x16xf32>
    %149 = vector.extract_strided_slice %147 {offsets = [0, 16], sizes = [8, 16], strides = [1, 1]} : vector<8x64xf32> to vector<8x16xf32>
    %150 = vector.extract_strided_slice %147 {offsets = [0, 32], sizes = [8, 16], strides = [1, 1]} : vector<8x64xf32> to vector<8x16xf32>
    %151 = vector.extract_strided_slice %147 {offsets = [0, 48], sizes = [8, 16], strides = [1, 1]} : vector<8x64xf32> to vector<8x16xf32>
    %c0_58 = arith.constant 0 : index
    %c0_59 = arith.constant 0 : index
    %152 = vector.load %arg5[%c0_58, %c0_59] : memref<8x16xf32, #tpu.memory_space<vmem>>, vector<8x16xf32>
    %153 = arith.mulf %149, %152 : vector<8x16xf32>
    %154 = arith.mulf %148, %150 : vector<8x16xf32>
    %155 = arith.addf %153, %154 : vector<8x16xf32>
    %156 = math.tanh %155 : vector<8x16xf32>
    %157 = arith.mulf %151, %156 : vector<8x16xf32>
    %c0_60 = arith.constant 0 : index
    %c0_61 = arith.constant 0 : index
    %158 = vector.load %arg5[%c0_60, %c0_61] : memref<8x16xf32, #tpu.memory_space<vmem>>, vector<8x16xf32>
    tpu.vector_store %arg5[%c0_60, %c0_61], %155 {strides = array<i32>} : memref<8x16xf32, #tpu.memory_space<vmem>>, vector<8x16xf32>,
    %c0_62 = arith.constant 0 : index
    %c32_63 = arith.constant 32 : index
    %159 = vector.load %arg4[%c0_62, %c32_63] : memref<8x128xf32, #tpu.memory_space<vmem>>, vector<8x16xf32>
    tpu.vector_store %arg4[%c0_62, %c32_63], %157 {strides = array<i32>} : memref<8x128xf32, #tpu.memory_space<vmem>>, vector<8x16xf32>,
    %c4_i32 = arith.constant 4 : i32
    %160 = arith.addi %31, %c4_i32 : i32
    %161 = arith.index_cast %160 : i32 to index
    %c0_64 = arith.constant 0 : index
    %c0_65 = arith.constant 0 : index
    %162 = vector.load %arg1[%161, %c0_64, %c0_65] : memref<16x8x128xf32, #tpu.memory_space<vmem>>, vector<1x8x128xf32>
    %163 = vector.shape_cast %162 : vector<1x8x128xf32> to vector<8x128xf32>
    %c0_66 = arith.constant 0 : index
    %c0_67 = arith.constant 0 : index
    %164 = vector.load %arg4[%c0_66, %c0_67] : memref<8x128xf32, #tpu.memory_space<vmem>>, vector<8x128xf32>
    %165 = arith.addf %163, %164 : vector<8x128xf32>
    %166 = arith.truncf %165 : vector<8x128xf32> to vector<8x128xbf16>
    %cst_68 = arith.constant dense<0.000000e+00> : vector<8x128xf32>
    %167 = tpu.matmul %166, %3, %cst_68 {dimension_numbers = #tpu.dot_dimension_numbers<[1], [0], [0], [1], [0, 0, 1, 1], [], []>} : vector<8x128xbf16>, vector<128x128xbf16>, vector<8x128xf32> -> vector<8x128xf32>
    %168 = arith.negf %167 : vector<8x128xf32>
    %169 = math.exp %168 : vector<8x128xf32>
    %cst_69 = arith.constant 1.000000e+00 : f32
    %170 = vector.broadcast %cst_69 : f32 to vector<8x128xf32>
    %171 = arith.addf %170, %169 : vector<8x128xf32>
    %172 = arith.divf %170, %171 : vector<8x128xf32>
    %cst_70 = arith.constant 1.000000e+00 : f32
    %173 = vector.broadcast %cst_70 : f32 to vector<8x128xf32>
    %174 = arith.subf %172, %173 : vector<8x128xf32>
    %175 = arith.mulf %27, %174 : vector<8x128xf32>
    %176 = arith.addf %172, %175 : vector<8x128xf32>
    %c64_i32_71 = arith.constant 64 : i32
    %177 = tpu.dynamic_rotate %176 by %c64_i32_71 dim 1 : vector<8x128xf32>, i32 -> vector<8x128xf32>
    %178 = arith.select %30, %176, %177 : vector<8x128xi1>, vector<8x128xf32>
    %179 = vector.extract_strided_slice %178 {offsets = [0, 0], sizes = [8, 64], strides = [1, 1]} : vector<8x128xf32> to vector<8x64xf32>
    %180 = vector.extract_strided_slice %179 {offsets = [0, 0], sizes = [8, 16], strides = [1, 1]} : vector<8x64xf32> to vector<8x16xf32>
    %181 = vector.extract_strided_slice %179 {offsets = [0, 16], sizes = [8, 16], strides = [1, 1]} : vector<8x64xf32> to vector<8x16xf32>
    %182 = vector.extract_strided_slice %179 {offsets = [0, 32], sizes = [8, 16], strides = [1, 1]} : vector<8x64xf32> to vector<8x16xf32>
    %183 = vector.extract_strided_slice %179 {offsets = [0, 48], sizes = [8, 16], strides = [1, 1]} : vector<8x64xf32> to vector<8x16xf32>
    %c0_72 = arith.constant 0 : index
    %c0_73 = arith.constant 0 : index
    %184 = vector.load %arg5[%c0_72, %c0_73] : memref<8x16xf32, #tpu.memory_space<vmem>>, vector<8x16xf32>
    %185 = arith.mulf %181, %184 : vector<8x16xf32>
    %186 = arith.mulf %180, %182 : vector<8x16xf32>
    %187 = arith.addf %185, %186 : vector<8x16xf32>
    %188 = math.tanh %187 : vector<8x16xf32>
    %189 = arith.mulf %183, %188 : vector<8x16xf32>
    %c0_74 = arith.constant 0 : index
    %c0_75 = arith.constant 0 : index
    %190 = vector.load %arg5[%c0_74, %c0_75] : memref<8x16xf32, #tpu.memory_space<vmem>>, vector<8x16xf32>
    tpu.vector_store %arg5[%c0_74, %c0_75], %187 {strides = array<i32>} : memref<8x16xf32, #tpu.memory_space<vmem>>, vector<8x16xf32>,
    %c0_76 = arith.constant 0 : index
    %c32_77 = arith.constant 32 : index
    %191 = vector.load %arg4[%c0_76, %c32_77] : memref<8x128xf32, #tpu.memory_space<vmem>>, vector<8x16xf32>
    tpu.vector_store %arg4[%c0_76, %c32_77], %189 {strides = array<i32>} : memref<8x128xf32, #tpu.memory_space<vmem>>, vector<8x16xf32>,
    %c5_i32 = arith.constant 5 : i32
    %192 = arith.addi %31, %c5_i32 : i32
    %193 = arith.index_cast %192 : i32 to index
    %c0_78 = arith.constant 0 : index
    %c0_79 = arith.constant 0 : index
    %194 = vector.load %arg1[%193, %c0_78, %c0_79] : memref<16x8x128xf32, #tpu.memory_space<vmem>>, vector<1x8x128xf32>
    %195 = vector.shape_cast %194 : vector<1x8x128xf32> to vector<8x128xf32>
    %c0_80 = arith.constant 0 : index
    %c0_81 = arith.constant 0 : index
    %196 = vector.load %arg4[%c0_80, %c0_81] : memref<8x128xf32, #tpu.memory_space<vmem>>, vector<8x128xf32>
    %197 = arith.addf %195, %196 : vector<8x128xf32>
    %198 = arith.truncf %197 : vector<8x128xf32> to vector<8x128xbf16>
    %cst_82 = arith.constant dense<0.000000e+00> : vector<8x128xf32>
    %199 = tpu.matmul %198, %3, %cst_82 {dimension_numbers = #tpu.dot_dimension_numbers<[1], [0], [0], [1], [0, 0, 1, 1], [], []>} : vector<8x128xbf16>, vector<128x128xbf16>, vector<8x128xf32> -> vector<8x128xf32>
    %200 = arith.negf %199 : vector<8x128xf32>
    %201 = math.exp %200 : vector<8x128xf32>
    %cst_83 = arith.constant 1.000000e+00 : f32
    %202 = vector.broadcast %cst_83 : f32 to vector<8x128xf32>
    %203 = arith.addf %202, %201 : vector<8x128xf32>
    %204 = arith.divf %202, %203 : vector<8x128xf32>
    %cst_84 = arith.constant 1.000000e+00 : f32
    %205 = vector.broadcast %cst_84 : f32 to vector<8x128xf32>
    %206 = arith.subf %204, %205 : vector<8x128xf32>
    %207 = arith.mulf %27, %206 : vector<8x128xf32>
    %208 = arith.addf %204, %207 : vector<8x128xf32>
    %c64_i32_85 = arith.constant 64 : i32
    %209 = tpu.dynamic_rotate %208 by %c64_i32_85 dim 1 : vector<8x128xf32>, i32 -> vector<8x128xf32>
    %210 = arith.select %30, %208, %209 : vector<8x128xi1>, vector<8x128xf32>
    %211 = vector.extract_strided_slice %210 {offsets = [0, 0], sizes = [8, 64], strides = [1, 1]} : vector<8x128xf32> to vector<8x64xf32>
    %212 = vector.extract_strided_slice %211 {offsets = [0, 0], sizes = [8, 16], strides = [1, 1]} : vector<8x64xf32> to vector<8x16xf32>
    %213 = vector.extract_strided_slice %211 {offsets = [0, 16], sizes = [8, 16], strides = [1, 1]} : vector<8x64xf32> to vector<8x16xf32>
    %214 = vector.extract_strided_slice %211 {offsets = [0, 32], sizes = [8, 16], strides = [1, 1]} : vector<8x64xf32> to vector<8x16xf32>
    %215 = vector.extract_strided_slice %211 {offsets = [0, 48], sizes = [8, 16], strides = [1, 1]} : vector<8x64xf32> to vector<8x16xf32>
    %c0_86 = arith.constant 0 : index
    %c0_87 = arith.constant 0 : index
    %216 = vector.load %arg5[%c0_86, %c0_87] : memref<8x16xf32, #tpu.memory_space<vmem>>, vector<8x16xf32>
    %217 = arith.mulf %213, %216 : vector<8x16xf32>
    %218 = arith.mulf %212, %214 : vector<8x16xf32>
    %219 = arith.addf %217, %218 : vector<8x16xf32>
    %220 = math.tanh %219 : vector<8x16xf32>
    %221 = arith.mulf %215, %220 : vector<8x16xf32>
    %c0_88 = arith.constant 0 : index
    %c0_89 = arith.constant 0 : index
    %222 = vector.load %arg5[%c0_88, %c0_89] : memref<8x16xf32, #tpu.memory_space<vmem>>, vector<8x16xf32>
    tpu.vector_store %arg5[%c0_88, %c0_89], %219 {strides = array<i32>} : memref<8x16xf32, #tpu.memory_space<vmem>>, vector<8x16xf32>,
    %c0_90 = arith.constant 0 : index
    %c32_91 = arith.constant 32 : index
    %223 = vector.load %arg4[%c0_90, %c32_91] : memref<8x128xf32, #tpu.memory_space<vmem>>, vector<8x16xf32>
    tpu.vector_store %arg4[%c0_90, %c32_91], %221 {strides = array<i32>} : memref<8x128xf32, #tpu.memory_space<vmem>>, vector<8x16xf32>,
    %c6_i32 = arith.constant 6 : i32
    %224 = arith.addi %31, %c6_i32 : i32
    %225 = arith.index_cast %224 : i32 to index
    %c0_92 = arith.constant 0 : index
    %c0_93 = arith.constant 0 : index
    %226 = vector.load %arg1[%225, %c0_92, %c0_93] : memref<16x8x128xf32, #tpu.memory_space<vmem>>, vector<1x8x128xf32>
    %227 = vector.shape_cast %226 : vector<1x8x128xf32> to vector<8x128xf32>
    %c0_94 = arith.constant 0 : index
    %c0_95 = arith.constant 0 : index
    %228 = vector.load %arg4[%c0_94, %c0_95] : memref<8x128xf32, #tpu.memory_space<vmem>>, vector<8x128xf32>
    %229 = arith.addf %227, %228 : vector<8x128xf32>
    %230 = arith.truncf %229 : vector<8x128xf32> to vector<8x128xbf16>
    %cst_96 = arith.constant dense<0.000000e+00> : vector<8x128xf32>
    %231 = tpu.matmul %230, %3, %cst_96 {dimension_numbers = #tpu.dot_dimension_numbers<[1], [0], [0], [1], [0, 0, 1, 1], [], []>} : vector<8x128xbf16>, vector<128x128xbf16>, vector<8x128xf32> -> vector<8x128xf32>
    %232 = arith.negf %231 : vector<8x128xf32>
    %233 = math.exp %232 : vector<8x128xf32>
    %cst_97 = arith.constant 1.000000e+00 : f32
    %234 = vector.broadcast %cst_97 : f32 to vector<8x128xf32>
    %235 = arith.addf %234, %233 : vector<8x128xf32>
    %236 = arith.divf %234, %235 : vector<8x128xf32>
    %cst_98 = arith.constant 1.000000e+00 : f32
    %237 = vector.broadcast %cst_98 : f32 to vector<8x128xf32>
    %238 = arith.subf %236, %237 : vector<8x128xf32>
    %239 = arith.mulf %27, %238 : vector<8x128xf32>
    %240 = arith.addf %236, %239 : vector<8x128xf32>
    %c64_i32_99 = arith.constant 64 : i32
    %241 = tpu.dynamic_rotate %240 by %c64_i32_99 dim 1 : vector<8x128xf32>, i32 -> vector<8x128xf32>
    %242 = arith.select %30, %240, %241 : vector<8x128xi1>, vector<8x128xf32>
    %243 = vector.extract_strided_slice %242 {offsets = [0, 0], sizes = [8, 64], strides = [1, 1]} : vector<8x128xf32> to vector<8x64xf32>
    %244 = vector.extract_strided_slice %243 {offsets = [0, 0], sizes = [8, 16], strides = [1, 1]} : vector<8x64xf32> to vector<8x16xf32>
    %245 = vector.extract_strided_slice %243 {offsets = [0, 16], sizes = [8, 16], strides = [1, 1]} : vector<8x64xf32> to vector<8x16xf32>
    %246 = vector.extract_strided_slice %243 {offsets = [0, 32], sizes = [8, 16], strides = [1, 1]} : vector<8x64xf32> to vector<8x16xf32>
    %247 = vector.extract_strided_slice %243 {offsets = [0, 48], sizes = [8, 16], strides = [1, 1]} : vector<8x64xf32> to vector<8x16xf32>
    %c0_100 = arith.constant 0 : index
    %c0_101 = arith.constant 0 : index
    %248 = vector.load %arg5[%c0_100, %c0_101] : memref<8x16xf32, #tpu.memory_space<vmem>>, vector<8x16xf32>
    %249 = arith.mulf %245, %248 : vector<8x16xf32>
    %250 = arith.mulf %244, %246 : vector<8x16xf32>
    %251 = arith.addf %249, %250 : vector<8x16xf32>
    %252 = math.tanh %251 : vector<8x16xf32>
    %253 = arith.mulf %247, %252 : vector<8x16xf32>
    %c0_102 = arith.constant 0 : index
    %c0_103 = arith.constant 0 : index
    %254 = vector.load %arg5[%c0_102, %c0_103] : memref<8x16xf32, #tpu.memory_space<vmem>>, vector<8x16xf32>
    tpu.vector_store %arg5[%c0_102, %c0_103], %251 {strides = array<i32>} : memref<8x16xf32, #tpu.memory_space<vmem>>, vector<8x16xf32>,
    %c0_104 = arith.constant 0 : index
    %c32_105 = arith.constant 32 : index
    %255 = vector.load %arg4[%c0_104, %c32_105] : memref<8x128xf32, #tpu.memory_space<vmem>>, vector<8x16xf32>
    tpu.vector_store %arg4[%c0_104, %c32_105], %253 {strides = array<i32>} : memref<8x128xf32, #tpu.memory_space<vmem>>, vector<8x16xf32>,
    %c7_i32 = arith.constant 7 : i32
    %256 = arith.addi %31, %c7_i32 : i32
    %257 = arith.index_cast %256 : i32 to index
    %c0_106 = arith.constant 0 : index
    %c0_107 = arith.constant 0 : index
    %258 = vector.load %arg1[%257, %c0_106, %c0_107] : memref<16x8x128xf32, #tpu.memory_space<vmem>>, vector<1x8x128xf32>
    %259 = vector.shape_cast %258 : vector<1x8x128xf32> to vector<8x128xf32>
    %c0_108 = arith.constant 0 : index
    %c0_109 = arith.constant 0 : index
    %260 = vector.load %arg4[%c0_108, %c0_109] : memref<8x128xf32, #tpu.memory_space<vmem>>, vector<8x128xf32>
    %261 = arith.addf %259, %260 : vector<8x128xf32>
    %262 = arith.truncf %261 : vector<8x128xf32> to vector<8x128xbf16>
    %cst_110 = arith.constant dense<0.000000e+00> : vector<8x128xf32>
    %263 = tpu.matmul %262, %3, %cst_110 {dimension_numbers = #tpu.dot_dimension_numbers<[1], [0], [0], [1], [0, 0, 1, 1], [], []>} : vector<8x128xbf16>, vector<128x128xbf16>, vector<8x128xf32> -> vector<8x128xf32>
    %264 = arith.negf %263 : vector<8x128xf32>
    %265 = math.exp %264 : vector<8x128xf32>
    %cst_111 = arith.constant 1.000000e+00 : f32
    %266 = vector.broadcast %cst_111 : f32 to vector<8x128xf32>
    %267 = arith.addf %266, %265 : vector<8x128xf32>
    %268 = arith.divf %266, %267 : vector<8x128xf32>
    %cst_112 = arith.constant 1.000000e+00 : f32
    %269 = vector.broadcast %cst_112 : f32 to vector<8x128xf32>
    %270 = arith.subf %268, %269 : vector<8x128xf32>
    %271 = arith.mulf %27, %270 : vector<8x128xf32>
    %272 = arith.addf %268, %271 : vector<8x128xf32>
    %c64_i32_113 = arith.constant 64 : i32
    %273 = tpu.dynamic_rotate %272 by %c64_i32_113 dim 1 : vector<8x128xf32>, i32 -> vector<8x128xf32>
    %274 = arith.select %30, %272, %273 : vector<8x128xi1>, vector<8x128xf32>
    %275 = vector.extract_strided_slice %274 {offsets = [0, 0], sizes = [8, 64], strides = [1, 1]} : vector<8x128xf32> to vector<8x64xf32>
    %276 = vector.extract_strided_slice %275 {offsets = [0, 0], sizes = [8, 16], strides = [1, 1]} : vector<8x64xf32> to vector<8x16xf32>
    %277 = vector.extract_strided_slice %275 {offsets = [0, 16], sizes = [8, 16], strides = [1, 1]} : vector<8x64xf32> to vector<8x16xf32>
    %278 = vector.extract_strided_slice %275 {offsets = [0, 32], sizes = [8, 16], strides = [1, 1]} : vector<8x64xf32> to vector<8x16xf32>
    %279 = vector.extract_strided_slice %275 {offsets = [0, 48], sizes = [8, 16], strides = [1, 1]} : vector<8x64xf32> to vector<8x16xf32>
    %c0_114 = arith.constant 0 : index
    %c0_115 = arith.constant 0 : index
    %280 = vector.load %arg5[%c0_114, %c0_115] : memref<8x16xf32, #tpu.memory_space<vmem>>, vector<8x16xf32>
    %281 = arith.mulf %277, %280 : vector<8x16xf32>
    %282 = arith.mulf %276, %278 : vector<8x16xf32>
    %283 = arith.addf %281, %282 : vector<8x16xf32>
    %284 = math.tanh %283 : vector<8x16xf32>
    %285 = arith.mulf %279, %284 : vector<8x16xf32>
    %c0_116 = arith.constant 0 : index
    %c0_117 = arith.constant 0 : index
    %286 = vector.load %arg5[%c0_116, %c0_117] : memref<8x16xf32, #tpu.memory_space<vmem>>, vector<8x16xf32>
    tpu.vector_store %arg5[%c0_116, %c0_117], %283 {strides = array<i32>} : memref<8x16xf32, #tpu.memory_space<vmem>>, vector<8x16xf32>,
    %c0_118 = arith.constant 0 : index
    %c32_119 = arith.constant 32 : index
    %287 = vector.load %arg4[%c0_118, %c32_119] : memref<8x128xf32, #tpu.memory_space<vmem>>, vector<8x16xf32>
    tpu.vector_store %arg4[%c0_118, %c32_119], %285 {strides = array<i32>} : memref<8x128xf32, #tpu.memory_space<vmem>>, vector<8x16xf32>,
    %288 = tpu.concatenate %61, %93, %125, %157, %189, %221, %253, %285 in 1 : vector<8x16xf32>, vector<8x16xf32>, vector<8x16xf32>, vector<8x16xf32>, vector<8x16xf32>, vector<8x16xf32>, vector<8x16xf32>, vector<8x16xf32> -> vector<8x128xf32>
    %289 = arith.index_cast %c0_i32_6 : i32 to index
    %c0_120 = arith.constant 0 : index
    %c0_121 = arith.constant 0 : index
    %290 = vector.load %arg3[%289, %c0_120, %c0_121] : memref<2x8x128xf32, #tpu.memory_space<vmem>>, vector<1x8x128xf32>
    %291 = vector.shape_cast %290 : vector<1x8x128xf32> to vector<8x128xf32>
    %292 = vector.shape_cast %288 : vector<8x128xf32> to vector<1x8x128xf32>
    tpu.vector_store %arg3[%289, %c0_120, %c0_121], %292 {strides = array<i32>} : memref<2x8x128xf32, #tpu.memory_space<vmem>>, vector<1x8x128xf32>,
    %c1_i32_122 = arith.constant 1 : i32
    %c8_i32_123 = arith.constant 8 : i32
    %293 = arith.muli %c1_i32_122, %c8_i32_123 : i32
    %c0_i32_124 = arith.constant 0 : i32
    %294 = arith.addi %293, %c0_i32_124 : i32
    %295 = arith.index_cast %294 : i32 to index
    %c0_125 = arith.constant 0 : index
    %c0_126 = arith.constant 0 : index
    %296 = vector.load %arg1[%295, %c0_125, %c0_126] : memref<16x8x128xf32, #tpu.memory_space<vmem>>, vector<1x8x128xf32>
    %297 = vector.shape_cast %296 : vector<1x8x128xf32> to vector<8x128xf32>
    %c0_127 = arith.constant 0 : index
    %c0_128 = arith.constant 0 : index
    %298 = vector.load %arg4[%c0_127, %c0_128] : memref<8x128xf32, #tpu.memory_space<vmem>>, vector<8x128xf32>
    %299 = arith.addf %297, %298 : vector<8x128xf32>
    %300 = arith.truncf %299 : vector<8x128xf32> to vector<8x128xbf16>
    %cst_129 = arith.constant dense<0.000000e+00> : vector<8x128xf32>
    %301 = tpu.matmul %300, %3, %cst_129 {dimension_numbers = #tpu.dot_dimension_numbers<[1], [0], [0], [1], [0, 0, 1, 1], [], []>} : vector<8x128xbf16>, vector<128x128xbf16>, vector<8x128xf32> -> vector<8x128xf32>
    %302 = arith.negf %301 : vector<8x128xf32>
    %303 = math.exp %302 : vector<8x128xf32>
    %cst_130 = arith.constant 1.000000e+00 : f32
    %304 = vector.broadcast %cst_130 : f32 to vector<8x128xf32>
    %305 = arith.addf %304, %303 : vector<8x128xf32>
    %306 = arith.divf %304, %305 : vector<8x128xf32>
    %cst_131 = arith.constant 1.000000e+00 : f32
    %307 = vector.broadcast %cst_131 : f32 to vector<8x128xf32>
    %308 = arith.subf %306, %307 : vector<8x128xf32>
    %309 = arith.mulf %27, %308 : vector<8x128xf32>
    %310 = arith.addf %306, %309 : vector<8x128xf32>
    %c64_i32_132 = arith.constant 64 : i32
    %311 = tpu.dynamic_rotate %310 by %c64_i32_132 dim 1 : vector<8x128xf32>, i32 -> vector<8x128xf32>
    %312 = arith.select %30, %310, %311 : vector<8x128xi1>, vector<8x128xf32>
    %313 = vector.extract_strided_slice %312 {offsets = [0, 0], sizes = [8, 64], strides = [1, 1]} : vector<8x128xf32> to vector<8x64xf32>
    %314 = vector.extract_strided_slice %313 {offsets = [0, 0], sizes = [8, 16], strides = [1, 1]} : vector<8x64xf32> to vector<8x16xf32>
    %315 = vector.extract_strided_slice %313 {offsets = [0, 16], sizes = [8, 16], strides = [1, 1]} : vector<8x64xf32> to vector<8x16xf32>
    %316 = vector.extract_strided_slice %313 {offsets = [0, 32], sizes = [8, 16], strides = [1, 1]} : vector<8x64xf32> to vector<8x16xf32>
    %317 = vector.extract_strided_slice %313 {offsets = [0, 48], sizes = [8, 16], strides = [1, 1]} : vector<8x64xf32> to vector<8x16xf32>
    %c0_133 = arith.constant 0 : index
    %c0_134 = arith.constant 0 : index
    %318 = vector.load %arg5[%c0_133, %c0_134] : memref<8x16xf32, #tpu.memory_space<vmem>>, vector<8x16xf32>
    %319 = arith.mulf %315, %318 : vector<8x16xf32>
    %320 = arith.mulf %314, %316 : vector<8x16xf32>
    %321 = arith.addf %319, %320 : vector<8x16xf32>
    %322 = math.tanh %321 : vector<8x16xf32>
    %323 = arith.mulf %317, %322 : vector<8x16xf32>
    %c0_135 = arith.constant 0 : index
    %c0_136 = arith.constant 0 : index
    %324 = vector.load %arg5[%c0_135, %c0_136] : memref<8x16xf32, #tpu.memory_space<vmem>>, vector<8x16xf32>
    tpu.vector_store %arg5[%c0_135, %c0_136], %321 {strides = array<i32>} : memref<8x16xf32, #tpu.memory_space<vmem>>, vector<8x16xf32>,
    %c0_137 = arith.constant 0 : index
    %c32_138 = arith.constant 32 : index
    %325 = vector.load %arg4[%c0_137, %c32_138] : memref<8x128xf32, #tpu.memory_space<vmem>>, vector<8x16xf32>
    tpu.vector_store %arg4[%c0_137, %c32_138], %323 {strides = array<i32>} : memref<8x128xf32, #tpu.memory_space<vmem>>, vector<8x16xf32>,
    %c1_i32_139 = arith.constant 1 : i32
    %326 = arith.addi %293, %c1_i32_139 : i32
    %327 = arith.index_cast %326 : i32 to index
    %c0_140 = arith.constant 0 : index
    %c0_141 = arith.constant 0 : index
    %328 = vector.load %arg1[%327, %c0_140, %c0_141] : memref<16x8x128xf32, #tpu.memory_space<vmem>>, vector<1x8x128xf32>
    %329 = vector.shape_cast %328 : vector<1x8x128xf32> to vector<8x128xf32>
    %c0_142 = arith.constant 0 : index
    %c0_143 = arith.constant 0 : index
    %330 = vector.load %arg4[%c0_142, %c0_143] : memref<8x128xf32, #tpu.memory_space<vmem>>, vector<8x128xf32>
    %331 = arith.addf %329, %330 : vector<8x128xf32>
    %332 = arith.truncf %331 : vector<8x128xf32> to vector<8x128xbf16>
    %cst_144 = arith.constant dense<0.000000e+00> : vector<8x128xf32>
    %333 = tpu.matmul %332, %3, %cst_144 {dimension_numbers = #tpu.dot_dimension_numbers<[1], [0], [0], [1], [0, 0, 1, 1], [], []>} : vector<8x128xbf16>, vector<128x128xbf16>, vector<8x128xf32> -> vector<8x128xf32>
    %334 = arith.negf %333 : vector<8x128xf32>
    %335 = math.exp %334 : vector<8x128xf32>
    %cst_145 = arith.constant 1.000000e+00 : f32
    %336 = vector.broadcast %cst_145 : f32 to vector<8x128xf32>
    %337 = arith.addf %336, %335 : vector<8x128xf32>
    %338 = arith.divf %336, %337 : vector<8x128xf32>
    %cst_146 = arith.constant 1.000000e+00 : f32
    %339 = vector.broadcast %cst_146 : f32 to vector<8x128xf32>
    %340 = arith.subf %338, %339 : vector<8x128xf32>
    %341 = arith.mulf %27, %340 : vector<8x128xf32>
    %342 = arith.addf %338, %341 : vector<8x128xf32>
    %c64_i32_147 = arith.constant 64 : i32
    %343 = tpu.dynamic_rotate %342 by %c64_i32_147 dim 1 : vector<8x128xf32>, i32 -> vector<8x128xf32>
    %344 = arith.select %30, %342, %343 : vector<8x128xi1>, vector<8x128xf32>
    %345 = vector.extract_strided_slice %344 {offsets = [0, 0], sizes = [8, 64], strides = [1, 1]} : vector<8x128xf32> to vector<8x64xf32>
    %346 = vector.extract_strided_slice %345 {offsets = [0, 0], sizes = [8, 16], strides = [1, 1]} : vector<8x64xf32> to vector<8x16xf32>
    %347 = vector.extract_strided_slice %345 {offsets = [0, 16], sizes = [8, 16], strides = [1, 1]} : vector<8x64xf32> to vector<8x16xf32>
    %348 = vector.extract_strided_slice %345 {offsets = [0, 32], sizes = [8, 16], strides = [1, 1]} : vector<8x64xf32> to vector<8x16xf32>
    %349 = vector.extract_strided_slice %345 {offsets = [0, 48], sizes = [8, 16], strides = [1, 1]} : vector<8x64xf32> to vector<8x16xf32>
    %c0_148 = arith.constant 0 : index
    %c0_149 = arith.constant 0 : index
    %350 = vector.load %arg5[%c0_148, %c0_149] : memref<8x16xf32, #tpu.memory_space<vmem>>, vector<8x16xf32>
    %351 = arith.mulf %347, %350 : vector<8x16xf32>
    %352 = arith.mulf %346, %348 : vector<8x16xf32>
    %353 = arith.addf %351, %352 : vector<8x16xf32>
    %354 = math.tanh %353 : vector<8x16xf32>
    %355 = arith.mulf %349, %354 : vector<8x16xf32>
    %c0_150 = arith.constant 0 : index
    %c0_151 = arith.constant 0 : index
    %356 = vector.load %arg5[%c0_150, %c0_151] : memref<8x16xf32, #tpu.memory_space<vmem>>, vector<8x16xf32>
    tpu.vector_store %arg5[%c0_150, %c0_151], %353 {strides = array<i32>} : memref<8x16xf32, #tpu.memory_space<vmem>>, vector<8x16xf32>,
    %c0_152 = arith.constant 0 : index
    %c32_153 = arith.constant 32 : index
    %357 = vector.load %arg4[%c0_152, %c32_153] : memref<8x128xf32, #tpu.memory_space<vmem>>, vector<8x16xf32>
    tpu.vector_store %arg4[%c0_152, %c32_153], %355 {strides = array<i32>} : memref<8x128xf32, #tpu.memory_space<vmem>>, vector<8x16xf32>,
    %c2_i32_154 = arith.constant 2 : i32
    %358 = arith.addi %293, %c2_i32_154 : i32
    %359 = arith.index_cast %358 : i32 to index
    %c0_155 = arith.constant 0 : index
    %c0_156 = arith.constant 0 : index
    %360 = vector.load %arg1[%359, %c0_155, %c0_156] : memref<16x8x128xf32, #tpu.memory_space<vmem>>, vector<1x8x128xf32>
    %361 = vector.shape_cast %360 : vector<1x8x128xf32> to vector<8x128xf32>
    %c0_157 = arith.constant 0 : index
    %c0_158 = arith.constant 0 : index
    %362 = vector.load %arg4[%c0_157, %c0_158] : memref<8x128xf32, #tpu.memory_space<vmem>>, vector<8x128xf32>
    %363 = arith.addf %361, %362 : vector<8x128xf32>
    %364 = arith.truncf %363 : vector<8x128xf32> to vector<8x128xbf16>
    %cst_159 = arith.constant dense<0.000000e+00> : vector<8x128xf32>
    %365 = tpu.matmul %364, %3, %cst_159 {dimension_numbers = #tpu.dot_dimension_numbers<[1], [0], [0], [1], [0, 0, 1, 1], [], []>} : vector<8x128xbf16>, vector<128x128xbf16>, vector<8x128xf32> -> vector<8x128xf32>
    %366 = arith.negf %365 : vector<8x128xf32>
    %367 = math.exp %366 : vector<8x128xf32>
    %cst_160 = arith.constant 1.000000e+00 : f32
    %368 = vector.broadcast %cst_160 : f32 to vector<8x128xf32>
    %369 = arith.addf %368, %367 : vector<8x128xf32>
    %370 = arith.divf %368, %369 : vector<8x128xf32>
    %cst_161 = arith.constant 1.000000e+00 : f32
    %371 = vector.broadcast %cst_161 : f32 to vector<8x128xf32>
    %372 = arith.subf %370, %371 : vector<8x128xf32>
    %373 = arith.mulf %27, %372 : vector<8x128xf32>
    %374 = arith.addf %370, %373 : vector<8x128xf32>
    %c64_i32_162 = arith.constant 64 : i32
    %375 = tpu.dynamic_rotate %374 by %c64_i32_162 dim 1 : vector<8x128xf32>, i32 -> vector<8x128xf32>
    %376 = arith.select %30, %374, %375 : vector<8x128xi1>, vector<8x128xf32>
    %377 = vector.extract_strided_slice %376 {offsets = [0, 0], sizes = [8, 64], strides = [1, 1]} : vector<8x128xf32> to vector<8x64xf32>
    %378 = vector.extract_strided_slice %377 {offsets = [0, 0], sizes = [8, 16], strides = [1, 1]} : vector<8x64xf32> to vector<8x16xf32>
    %379 = vector.extract_strided_slice %377 {offsets = [0, 16], sizes = [8, 16], strides = [1, 1]} : vector<8x64xf32> to vector<8x16xf32>
    %380 = vector.extract_strided_slice %377 {offsets = [0, 32], sizes = [8, 16], strides = [1, 1]} : vector<8x64xf32> to vector<8x16xf32>
    %381 = vector.extract_strided_slice %377 {offsets = [0, 48], sizes = [8, 16], strides = [1, 1]} : vector<8x64xf32> to vector<8x16xf32>
    %c0_163 = arith.constant 0 : index
    %c0_164 = arith.constant 0 : index
    %382 = vector.load %arg5[%c0_163, %c0_164] : memref<8x16xf32, #tpu.memory_space<vmem>>, vector<8x16xf32>
    %383 = arith.mulf %379, %382 : vector<8x16xf32>
    %384 = arith.mulf %378, %380 : vector<8x16xf32>
    %385 = arith.addf %383, %384 : vector<8x16xf32>
    %386 = math.tanh %385 : vector<8x16xf32>
    %387 = arith.mulf %381, %386 : vector<8x16xf32>
    %c0_165 = arith.constant 0 : index
    %c0_166 = arith.constant 0 : index
    %388 = vector.load %arg5[%c0_165, %c0_166] : memref<8x16xf32, #tpu.memory_space<vmem>>, vector<8x16xf32>
    tpu.vector_store %arg5[%c0_165, %c0_166], %385 {strides = array<i32>} : memref<8x16xf32, #tpu.memory_space<vmem>>, vector<8x16xf32>,
    %c0_167 = arith.constant 0 : index
    %c32_168 = arith.constant 32 : index
    %389 = vector.load %arg4[%c0_167, %c32_168] : memref<8x128xf32, #tpu.memory_space<vmem>>, vector<8x16xf32>
    tpu.vector_store %arg4[%c0_167, %c32_168], %387 {strides = array<i32>} : memref<8x128xf32, #tpu.memory_space<vmem>>, vector<8x16xf32>,
    %c3_i32_169 = arith.constant 3 : i32
    %390 = arith.addi %293, %c3_i32_169 : i32
    %391 = arith.index_cast %390 : i32 to index
    %c0_170 = arith.constant 0 : index
    %c0_171 = arith.constant 0 : index
    %392 = vector.load %arg1[%391, %c0_170, %c0_171] : memref<16x8x128xf32, #tpu.memory_space<vmem>>, vector<1x8x128xf32>
    %393 = vector.shape_cast %392 : vector<1x8x128xf32> to vector<8x128xf32>
    %c0_172 = arith.constant 0 : index
    %c0_173 = arith.constant 0 : index
    %394 = vector.load %arg4[%c0_172, %c0_173] : memref<8x128xf32, #tpu.memory_space<vmem>>, vector<8x128xf32>
    %395 = arith.addf %393, %394 : vector<8x128xf32>
    %396 = arith.truncf %395 : vector<8x128xf32> to vector<8x128xbf16>
    %cst_174 = arith.constant dense<0.000000e+00> : vector<8x128xf32>
    %397 = tpu.matmul %396, %3, %cst_174 {dimension_numbers = #tpu.dot_dimension_numbers<[1], [0], [0], [1], [0, 0, 1, 1], [], []>} : vector<8x128xbf16>, vector<128x128xbf16>, vector<8x128xf32> -> vector<8x128xf32>
    %398 = arith.negf %397 : vector<8x128xf32>
    %399 = math.exp %398 : vector<8x128xf32>
    %cst_175 = arith.constant 1.000000e+00 : f32
    %400 = vector.broadcast %cst_175 : f32 to vector<8x128xf32>
    %401 = arith.addf %400, %399 : vector<8x128xf32>
    %402 = arith.divf %400, %401 : vector<8x128xf32>
    %cst_176 = arith.constant 1.000000e+00 : f32
    %403 = vector.broadcast %cst_176 : f32 to vector<8x128xf32>
    %404 = arith.subf %402, %403 : vector<8x128xf32>
    %405 = arith.mulf %27, %404 : vector<8x128xf32>
    %406 = arith.addf %402, %405 : vector<8x128xf32>
    %c64_i32_177 = arith.constant 64 : i32
    %407 = tpu.dynamic_rotate %406 by %c64_i32_177 dim 1 : vector<8x128xf32>, i32 -> vector<8x128xf32>
    %408 = arith.select %30, %406, %407 : vector<8x128xi1>, vector<8x128xf32>
    %409 = vector.extract_strided_slice %408 {offsets = [0, 0], sizes = [8, 64], strides = [1, 1]} : vector<8x128xf32> to vector<8x64xf32>
    %410 = vector.extract_strided_slice %409 {offsets = [0, 0], sizes = [8, 16], strides = [1, 1]} : vector<8x64xf32> to vector<8x16xf32>
    %411 = vector.extract_strided_slice %409 {offsets = [0, 16], sizes = [8, 16], strides = [1, 1]} : vector<8x64xf32> to vector<8x16xf32>
    %412 = vector.extract_strided_slice %409 {offsets = [0, 32], sizes = [8, 16], strides = [1, 1]} : vector<8x64xf32> to vector<8x16xf32>
    %413 = vector.extract_strided_slice %409 {offsets = [0, 48], sizes = [8, 16], strides = [1, 1]} : vector<8x64xf32> to vector<8x16xf32>
    %c0_178 = arith.constant 0 : index
    %c0_179 = arith.constant 0 : index
    %414 = vector.load %arg5[%c0_178, %c0_179] : memref<8x16xf32, #tpu.memory_space<vmem>>, vector<8x16xf32>
    %415 = arith.mulf %411, %414 : vector<8x16xf32>
    %416 = arith.mulf %410, %412 : vector<8x16xf32>
    %417 = arith.addf %415, %416 : vector<8x16xf32>
    %418 = math.tanh %417 : vector<8x16xf32>
    %419 = arith.mulf %413, %418 : vector<8x16xf32>
    %c0_180 = arith.constant 0 : index
    %c0_181 = arith.constant 0 : index
    %420 = vector.load %arg5[%c0_180, %c0_181] : memref<8x16xf32, #tpu.memory_space<vmem>>, vector<8x16xf32>
    tpu.vector_store %arg5[%c0_180, %c0_181], %417 {strides = array<i32>} : memref<8x16xf32, #tpu.memory_space<vmem>>, vector<8x16xf32>,
    %c0_182 = arith.constant 0 : index
    %c32_183 = arith.constant 32 : index
    %421 = vector.load %arg4[%c0_182, %c32_183] : memref<8x128xf32, #tpu.memory_space<vmem>>, vector<8x16xf32>
    tpu.vector_store %arg4[%c0_182, %c32_183], %419 {strides = array<i32>} : memref<8x128xf32, #tpu.memory_space<vmem>>, vector<8x16xf32>,
    %c4_i32_184 = arith.constant 4 : i32
    %422 = arith.addi %293, %c4_i32_184 : i32
    %423 = arith.index_cast %422 : i32 to index
    %c0_185 = arith.constant 0 : index
    %c0_186 = arith.constant 0 : index
    %424 = vector.load %arg1[%423, %c0_185, %c0_186] : memref<16x8x128xf32, #tpu.memory_space<vmem>>, vector<1x8x128xf32>
    %425 = vector.shape_cast %424 : vector<1x8x128xf32> to vector<8x128xf32>
    %c0_187 = arith.constant 0 : index
    %c0_188 = arith.constant 0 : index
    %426 = vector.load %arg4[%c0_187, %c0_188] : memref<8x128xf32, #tpu.memory_space<vmem>>, vector<8x128xf32>
    %427 = arith.addf %425, %426 : vector<8x128xf32>
    %428 = arith.truncf %427 : vector<8x128xf32> to vector<8x128xbf16>
    %cst_189 = arith.constant dense<0.000000e+00> : vector<8x128xf32>
    %429 = tpu.matmul %428, %3, %cst_189 {dimension_numbers = #tpu.dot_dimension_numbers<[1], [0], [0], [1], [0, 0, 1, 1], [], []>} : vector<8x128xbf16>, vector<128x128xbf16>, vector<8x128xf32> -> vector<8x128xf32>
    %430 = arith.negf %429 : vector<8x128xf32>
    %431 = math.exp %430 : vector<8x128xf32>
    %cst_190 = arith.constant 1.000000e+00 : f32
    %432 = vector.broadcast %cst_190 : f32 to vector<8x128xf32>
    %433 = arith.addf %432, %431 : vector<8x128xf32>
    %434 = arith.divf %432, %433 : vector<8x128xf32>
    %cst_191 = arith.constant 1.000000e+00 : f32
    %435 = vector.broadcast %cst_191 : f32 to vector<8x128xf32>
    %436 = arith.subf %434, %435 : vector<8x128xf32>
    %437 = arith.mulf %27, %436 : vector<8x128xf32>
    %438 = arith.addf %434, %437 : vector<8x128xf32>
    %c64_i32_192 = arith.constant 64 : i32
    %439 = tpu.dynamic_rotate %438 by %c64_i32_192 dim 1 : vector<8x128xf32>, i32 -> vector<8x128xf32>
    %440 = arith.select %30, %438, %439 : vector<8x128xi1>, vector<8x128xf32>
    %441 = vector.extract_strided_slice %440 {offsets = [0, 0], sizes = [8, 64], strides = [1, 1]} : vector<8x128xf32> to vector<8x64xf32>
    %442 = vector.extract_strided_slice %441 {offsets = [0, 0], sizes = [8, 16], strides = [1, 1]} : vector<8x64xf32> to vector<8x16xf32>
    %443 = vector.extract_strided_slice %441 {offsets = [0, 16], sizes = [8, 16], strides = [1, 1]} : vector<8x64xf32> to vector<8x16xf32>
    %444 = vector.extract_strided_slice %441 {offsets = [0, 32], sizes = [8, 16], strides = [1, 1]} : vector<8x64xf32> to vector<8x16xf32>
    %445 = vector.extract_strided_slice %441 {offsets = [0, 48], sizes = [8, 16], strides = [1, 1]} : vector<8x64xf32> to vector<8x16xf32>
    %c0_193 = arith.constant 0 : index
    %c0_194 = arith.constant 0 : index
    %446 = vector.load %arg5[%c0_193, %c0_194] : memref<8x16xf32, #tpu.memory_space<vmem>>, vector<8x16xf32>
    %447 = arith.mulf %443, %446 : vector<8x16xf32>
    %448 = arith.mulf %442, %444 : vector<8x16xf32>
    %449 = arith.addf %447, %448 : vector<8x16xf32>
    %450 = math.tanh %449 : vector<8x16xf32>
    %451 = arith.mulf %445, %450 : vector<8x16xf32>
    %c0_195 = arith.constant 0 : index
    %c0_196 = arith.constant 0 : index
    %452 = vector.load %arg5[%c0_195, %c0_196] : memref<8x16xf32, #tpu.memory_space<vmem>>, vector<8x16xf32>
    tpu.vector_store %arg5[%c0_195, %c0_196], %449 {strides = array<i32>} : memref<8x16xf32, #tpu.memory_space<vmem>>, vector<8x16xf32>,
    %c0_197 = arith.constant 0 : index
    %c32_198 = arith.constant 32 : index
    %453 = vector.load %arg4[%c0_197, %c32_198] : memref<8x128xf32, #tpu.memory_space<vmem>>, vector<8x16xf32>
    tpu.vector_store %arg4[%c0_197, %c32_198], %451 {strides = array<i32>} : memref<8x128xf32, #tpu.memory_space<vmem>>, vector<8x16xf32>,
    %c5_i32_199 = arith.constant 5 : i32
    %454 = arith.addi %293, %c5_i32_199 : i32
    %455 = arith.index_cast %454 : i32 to index
    %c0_200 = arith.constant 0 : index
    %c0_201 = arith.constant 0 : index
    %456 = vector.load %arg1[%455, %c0_200, %c0_201] : memref<16x8x128xf32, #tpu.memory_space<vmem>>, vector<1x8x128xf32>
    %457 = vector.shape_cast %456 : vector<1x8x128xf32> to vector<8x128xf32>
    %c0_202 = arith.constant 0 : index
    %c0_203 = arith.constant 0 : index
    %458 = vector.load %arg4[%c0_202, %c0_203] : memref<8x128xf32, #tpu.memory_space<vmem>>, vector<8x128xf32>
    %459 = arith.addf %457, %458 : vector<8x128xf32>
    %460 = arith.truncf %459 : vector<8x128xf32> to vector<8x128xbf16>
    %cst_204 = arith.constant dense<0.000000e+00> : vector<8x128xf32>
    %461 = tpu.matmul %460, %3, %cst_204 {dimension_numbers = #tpu.dot_dimension_numbers<[1], [0], [0], [1], [0, 0, 1, 1], [], []>} : vector<8x128xbf16>, vector<128x128xbf16>, vector<8x128xf32> -> vector<8x128xf32>
    %462 = arith.negf %461 : vector<8x128xf32>
    %463 = math.exp %462 : vector<8x128xf32>
    %cst_205 = arith.constant 1.000000e+00 : f32
    %464 = vector.broadcast %cst_205 : f32 to vector<8x128xf32>
    %465 = arith.addf %464, %463 : vector<8x128xf32>
    %466 = arith.divf %464, %465 : vector<8x128xf32>
    %cst_206 = arith.constant 1.000000e+00 : f32
    %467 = vector.broadcast %cst_206 : f32 to vector<8x128xf32>
    %468 = arith.subf %466, %467 : vector<8x128xf32>
    %469 = arith.mulf %27, %468 : vector<8x128xf32>
    %470 = arith.addf %466, %469 : vector<8x128xf32>
    %c64_i32_207 = arith.constant 64 : i32
    %471 = tpu.dynamic_rotate %470 by %c64_i32_207 dim 1 : vector<8x128xf32>, i32 -> vector<8x128xf32>
    %472 = arith.select %30, %470, %471 : vector<8x128xi1>, vector<8x128xf32>
    %473 = vector.extract_strided_slice %472 {offsets = [0, 0], sizes = [8, 64], strides = [1, 1]} : vector<8x128xf32> to vector<8x64xf32>
    %474 = vector.extract_strided_slice %473 {offsets = [0, 0], sizes = [8, 16], strides = [1, 1]} : vector<8x64xf32> to vector<8x16xf32>
    %475 = vector.extract_strided_slice %473 {offsets = [0, 16], sizes = [8, 16], strides = [1, 1]} : vector<8x64xf32> to vector<8x16xf32>
    %476 = vector.extract_strided_slice %473 {offsets = [0, 32], sizes = [8, 16], strides = [1, 1]} : vector<8x64xf32> to vector<8x16xf32>
    %477 = vector.extract_strided_slice %473 {offsets = [0, 48], sizes = [8, 16], strides = [1, 1]} : vector<8x64xf32> to vector<8x16xf32>
    %c0_208 = arith.constant 0 : index
    %c0_209 = arith.constant 0 : index
    %478 = vector.load %arg5[%c0_208, %c0_209] : memref<8x16xf32, #tpu.memory_space<vmem>>, vector<8x16xf32>
    %479 = arith.mulf %475, %478 : vector<8x16xf32>
    %480 = arith.mulf %474, %476 : vector<8x16xf32>
    %481 = arith.addf %479, %480 : vector<8x16xf32>
    %482 = math.tanh %481 : vector<8x16xf32>
    %483 = arith.mulf %477, %482 : vector<8x16xf32>
    %c0_210 = arith.constant 0 : index
    %c0_211 = arith.constant 0 : index
    %484 = vector.load %arg5[%c0_210, %c0_211] : memref<8x16xf32, #tpu.memory_space<vmem>>, vector<8x16xf32>
    tpu.vector_store %arg5[%c0_210, %c0_211], %481 {strides = array<i32>} : memref<8x16xf32, #tpu.memory_space<vmem>>, vector<8x16xf32>,
    %c0_212 = arith.constant 0 : index
    %c32_213 = arith.constant 32 : index
    %485 = vector.load %arg4[%c0_212, %c32_213] : memref<8x128xf32, #tpu.memory_space<vmem>>, vector<8x16xf32>
    tpu.vector_store %arg4[%c0_212, %c32_213], %483 {strides = array<i32>} : memref<8x128xf32, #tpu.memory_space<vmem>>, vector<8x16xf32>,
    %c6_i32_214 = arith.constant 6 : i32
    %486 = arith.addi %293, %c6_i32_214 : i32
    %487 = arith.index_cast %486 : i32 to index
    %c0_215 = arith.constant 0 : index
    %c0_216 = arith.constant 0 : index
    %488 = vector.load %arg1[%487, %c0_215, %c0_216] : memref<16x8x128xf32, #tpu.memory_space<vmem>>, vector<1x8x128xf32>
    %489 = vector.shape_cast %488 : vector<1x8x128xf32> to vector<8x128xf32>
    %c0_217 = arith.constant 0 : index
    %c0_218 = arith.constant 0 : index
    %490 = vector.load %arg4[%c0_217, %c0_218] : memref<8x128xf32, #tpu.memory_space<vmem>>, vector<8x128xf32>
    %491 = arith.addf %489, %490 : vector<8x128xf32>
    %492 = arith.truncf %491 : vector<8x128xf32> to vector<8x128xbf16>
    %cst_219 = arith.constant dense<0.000000e+00> : vector<8x128xf32>
    %493 = tpu.matmul %492, %3, %cst_219 {dimension_numbers = #tpu.dot_dimension_numbers<[1], [0], [0], [1], [0, 0, 1, 1], [], []>} : vector<8x128xbf16>, vector<128x128xbf16>, vector<8x128xf32> -> vector<8x128xf32>
    %494 = arith.negf %493 : vector<8x128xf32>
    %495 = math.exp %494 : vector<8x128xf32>
    %cst_220 = arith.constant 1.000000e+00 : f32
    %496 = vector.broadcast %cst_220 : f32 to vector<8x128xf32>
    %497 = arith.addf %496, %495 : vector<8x128xf32>
    %498 = arith.divf %496, %497 : vector<8x128xf32>
    %cst_221 = arith.constant 1.000000e+00 : f32
    %499 = vector.broadcast %cst_221 : f32 to vector<8x128xf32>
    %500 = arith.subf %498, %499 : vector<8x128xf32>
    %501 = arith.mulf %27, %500 : vector<8x128xf32>
    %502 = arith.addf %498, %501 : vector<8x128xf32>
    %c64_i32_222 = arith.constant 64 : i32
    %503 = tpu.dynamic_rotate %502 by %c64_i32_222 dim 1 : vector<8x128xf32>, i32 -> vector<8x128xf32>
    %504 = arith.select %30, %502, %503 : vector<8x128xi1>, vector<8x128xf32>
    %505 = vector.extract_strided_slice %504 {offsets = [0, 0], sizes = [8, 64], strides = [1, 1]} : vector<8x128xf32> to vector<8x64xf32>
    %506 = vector.extract_strided_slice %505 {offsets = [0, 0], sizes = [8, 16], strides = [1, 1]} : vector<8x64xf32> to vector<8x16xf32>
    %507 = vector.extract_strided_slice %505 {offsets = [0, 16], sizes = [8, 16], strides = [1, 1]} : vector<8x64xf32> to vector<8x16xf32>
    %508 = vector.extract_strided_slice %505 {offsets = [0, 32], sizes = [8, 16], strides = [1, 1]} : vector<8x64xf32> to vector<8x16xf32>
    %509 = vector.extract_strided_slice %505 {offsets = [0, 48], sizes = [8, 16], strides = [1, 1]} : vector<8x64xf32> to vector<8x16xf32>
    %c0_223 = arith.constant 0 : index
    %c0_224 = arith.constant 0 : index
    %510 = vector.load %arg5[%c0_223, %c0_224] : memref<8x16xf32, #tpu.memory_space<vmem>>, vector<8x16xf32>
    %511 = arith.mulf %507, %510 : vector<8x16xf32>
    %512 = arith.mulf %506, %508 : vector<8x16xf32>
    %513 = arith.addf %511, %512 : vector<8x16xf32>
    %514 = math.tanh %513 : vector<8x16xf32>
    %515 = arith.mulf %509, %514 : vector<8x16xf32>
    %c0_225 = arith.constant 0 : index
    %c0_226 = arith.constant 0 : index
    %516 = vector.load %arg5[%c0_225, %c0_226] : memref<8x16xf32, #tpu.memory_space<vmem>>, vector<8x16xf32>
    tpu.vector_store %arg5[%c0_225, %c0_226], %513 {strides = array<i32>} : memref<8x16xf32, #tpu.memory_space<vmem>>, vector<8x16xf32>,
    %c0_227 = arith.constant 0 : index
    %c32_228 = arith.constant 32 : index
    %517 = vector.load %arg4[%c0_227, %c32_228] : memref<8x128xf32, #tpu.memory_space<vmem>>, vector<8x16xf32>
    tpu.vector_store %arg4[%c0_227, %c32_228], %515 {strides = array<i32>} : memref<8x128xf32, #tpu.memory_space<vmem>>, vector<8x16xf32>,
    %c7_i32_229 = arith.constant 7 : i32
    %518 = arith.addi %293, %c7_i32_229 : i32
    %519 = arith.index_cast %518 : i32 to index
    %c0_230 = arith.constant 0 : index
    %c0_231 = arith.constant 0 : index
    %520 = vector.load %arg1[%519, %c0_230, %c0_231] : memref<16x8x128xf32, #tpu.memory_space<vmem>>, vector<1x8x128xf32>
    %521 = vector.shape_cast %520 : vector<1x8x128xf32> to vector<8x128xf32>
    %c0_232 = arith.constant 0 : index
    %c0_233 = arith.constant 0 : index
    %522 = vector.load %arg4[%c0_232, %c0_233] : memref<8x128xf32, #tpu.memory_space<vmem>>, vector<8x128xf32>
    %523 = arith.addf %521, %522 : vector<8x128xf32>
    %524 = arith.truncf %523 : vector<8x128xf32> to vector<8x128xbf16>
    %cst_234 = arith.constant dense<0.000000e+00> : vector<8x128xf32>
    %525 = tpu.matmul %524, %3, %cst_234 {dimension_numbers = #tpu.dot_dimension_numbers<[1], [0], [0], [1], [0, 0, 1, 1], [], []>} : vector<8x128xbf16>, vector<128x128xbf16>, vector<8x128xf32> -> vector<8x128xf32>
    %526 = arith.negf %525 : vector<8x128xf32>
    %527 = math.exp %526 : vector<8x128xf32>
    %cst_235 = arith.constant 1.000000e+00 : f32
    %528 = vector.broadcast %cst_235 : f32 to vector<8x128xf32>
    %529 = arith.addf %528, %527 : vector<8x128xf32>
    %530 = arith.divf %528, %529 : vector<8x128xf32>
    %cst_236 = arith.constant 1.000000e+00 : f32
    %531 = vector.broadcast %cst_236 : f32 to vector<8x128xf32>
    %532 = arith.subf %530, %531 : vector<8x128xf32>
    %533 = arith.mulf %27, %532 : vector<8x128xf32>
    %534 = arith.addf %530, %533 : vector<8x128xf32>
    %c64_i32_237 = arith.constant 64 : i32
    %535 = tpu.dynamic_rotate %534 by %c64_i32_237 dim 1 : vector<8x128xf32>, i32 -> vector<8x128xf32>
    %536 = arith.select %30, %534, %535 : vector<8x128xi1>, vector<8x128xf32>
    %537 = vector.extract_strided_slice %536 {offsets = [0, 0], sizes = [8, 64], strides = [1, 1]} : vector<8x128xf32> to vector<8x64xf32>
    %538 = vector.extract_strided_slice %537 {offsets = [0, 0], sizes = [8, 16], strides = [1, 1]} : vector<8x64xf32> to vector<8x16xf32>
    %539 = vector.extract_strided_slice %537 {offsets = [0, 16], sizes = [8, 16], strides = [1, 1]} : vector<8x64xf32> to vector<8x16xf32>
    %540 = vector.extract_strided_slice %537 {offsets = [0, 32], sizes = [8, 16], strides = [1, 1]} : vector<8x64xf32> to vector<8x16xf32>
    %541 = vector.extract_strided_slice %537 {offsets = [0, 48], sizes = [8, 16], strides = [1, 1]} : vector<8x64xf32> to vector<8x16xf32>
    %c0_238 = arith.constant 0 : index
    %c0_239 = arith.constant 0 : index
    %542 = vector.load %arg5[%c0_238, %c0_239] : memref<8x16xf32, #tpu.memory_space<vmem>>, vector<8x16xf32>
    %543 = arith.mulf %539, %542 : vector<8x16xf32>
    %544 = arith.mulf %538, %540 : vector<8x16xf32>
    %545 = arith.addf %543, %544 : vector<8x16xf32>
    %546 = math.tanh %545 : vector<8x16xf32>
    %547 = arith.mulf %541, %546 : vector<8x16xf32>
    %c0_240 = arith.constant 0 : index
    %c0_241 = arith.constant 0 : index
    %548 = vector.load %arg5[%c0_240, %c0_241] : memref<8x16xf32, #tpu.memory_space<vmem>>, vector<8x16xf32>
    tpu.vector_store %arg5[%c0_240, %c0_241], %545 {strides = array<i32>} : memref<8x16xf32, #tpu.memory_space<vmem>>, vector<8x16xf32>,
    %c0_242 = arith.constant 0 : index
    %c32_243 = arith.constant 32 : index
    %549 = vector.load %arg4[%c0_242, %c32_243] : memref<8x128xf32, #tpu.memory_space<vmem>>, vector<8x16xf32>
    tpu.vector_store %arg4[%c0_242, %c32_243], %547 {strides = array<i32>} : memref<8x128xf32, #tpu.memory_space<vmem>>, vector<8x16xf32>,
    %550 = tpu.concatenate %323, %355, %387, %419, %451, %483, %515, %547 in 1 : vector<8x16xf32>, vector<8x16xf32>, vector<8x16xf32>, vector<8x16xf32>, vector<8x16xf32>, vector<8x16xf32>, vector<8x16xf32>, vector<8x16xf32> -> vector<8x128xf32>
    %551 = arith.index_cast %c1_i32_122 : i32 to index
    %c0_244 = arith.constant 0 : index
    %c0_245 = arith.constant 0 : index
    %552 = vector.load %arg3[%551, %c0_244, %c0_245] : memref<2x8x128xf32, #tpu.memory_space<vmem>>, vector<1x8x128xf32>
    %553 = vector.shape_cast %552 : vector<1x8x128xf32> to vector<8x128xf32>
    %554 = vector.shape_cast %550 : vector<8x128xf32> to vector<1x8x128xf32>
    tpu.vector_store %arg3[%551, %c0_244, %c0_245], %554 {strides = array<i32>} : memref<2x8x128xf32, #tpu.memory_space<vmem>>, vector<1x8x128xf32>,
    %c2_i32_246 = arith.constant 2 : i32
    return
  }
  func.func @transform_0(%arg0: i32) -> (i32, i32, i32) {
    %c0_i32 = arith.constant 0 : i32
    %c0_i32_0 = arith.constant 0 : i32
    %c0_i32_1 = arith.constant 0 : i32
    return %arg0, %c0_i32, %c0_i32_0 : i32, i32, i32
  }
  func.func @transform_1(%arg0: i32) -> (i32, i32) {
    %c0_i32 = arith.constant 0 : i32
    %c0_i32_0 = arith.constant 0 : i32
    %c0_i32_1 = arith.constant 0 : i32
    return %c0_i32, %c0_i32_0 : i32, i32
  }
  func.func @transform_2(%arg0: i32) -> (i32, i32, i32) {
    %c0_i32 = arith.constant 0 : i32
    %c0_i32_0 = arith.constant 0 : i32
    %c0_i32_1 = arith.constant 0 : i32
    return %arg0, %c0_i32, %c0_i32_0 : i32, i32, i32
  }
}

</mosaic_0001>

<llo_original>
// kernel: tpu_custom_call.1
$region0: #{tpu_custom_call.1}
  #allocation0 [shape = 'u32[]', space=smem, size = 0x4, offset = 0x4, fixed_abs, tag = 'smem constant byte address 0x4 - core index']
  #allocation1 [shape = 'u32[72,128]{1,0:T(1,128)}', space=vmem, size = 0x9000, scoped, tag = 'internal scratch']
  #allocation2 [shape = 'f32[8,128]{1,0:T(8,128)}', space=vmem, size = 0x1000, scoped, tag = 'scratch operand']
  #allocation3 [shape = 'f32[8,16]{1,0:T(8,128)}', space=vmem, size = 0x1000, scoped, tag = 'scratch operand']
  %s0 = inlined_call_operand.hbm [shape: f32[16,8,128], index: 0, kind: input, shape index: {}]
  %s1 = inlined_call_operand.hbm [shape: bf16[128,128], index: 1, kind: input, shape index: {}]
  %s2 = inlined_call_operand.hbm [shape: f32[2,8,128], index: 2, kind: output, shape index: {}]
  %s3 = sld [smem:[#allocation0]]
  $region30: #{tpu_custom_call.1} parent=0
    _
  %s5 = ssub.s32 1, %s3
  %s6 = scalar_select 0, %s5, %s3
  $region1: #{tpu_custom_call.1} parent=0
    #allocation4 [shape = 'u8[65536]{0}', space=vmem, size = 0x10000, scoped, tag = 'input window, operand 0, single buffered']
    #allocation5 [shape = 's32[1]{0}', space=sflag, size = 0x4, scoped, tag = 'scoped memory for tpu_custom_call.1']
    #allocation6 [shape = 's32[1]{0}', space=sflag, size = 0x4, scoped, tag = 'scoped memory for tpu_custom_call.1']
    #allocation7 [shape = 'u8[32768]{0}', space=vmem, size = 0x8000, scoped, tag = 'input window, operand 1, single buffered']
    #allocation8 [shape = 's32[1]{0}', space=sflag, size = 0x4, scoped, tag = 'scoped memory for tpu_custom_call.1']
    #allocation9 [shape = 'u8[8192]{0}', space=vmem, size = 0x2000, scoped, tag = 'output window, operand 0, single buffered']
    %7 = vsyncpa [#allocation5], 0
    %8 = vsyncpa [#allocation8], 0
    %9 = vsyncpa [#allocation6], 0
    // Predicated region
    $region2: #{tpu_custom_call.1} parent=1 // pred_check
      _
    $region3: #{tpu_custom_call.1} parent=1 // pred_check_branch
      %11 = sbr.rel (0) target = $region5
    $region4: #{tpu_custom_call.1} parent=1 // pred_region
      %13 = vsyncadd [#allocation5], 0
      %s14 = sshll.u32 %s0, 4
      %s15 = int_to_ptr.hbm [resolvable:$true] %s14
      %s16 = sshll.u32 [#allocation4], 4
      %s17 = int_to_ptr.vmem [resolvable:$true] %s16
      %22 = dma.hbm_to_vmem [thread:$0]  %s15, 2048, %s17, [#allocation5], 128, 128, 8
    $region5: #{tpu_custom_call.1} parent=1 // pred_fallthru
      _
    // Predicated region
    $region6: #{tpu_custom_call.1} parent=1 // pred_check
      _
    $region7: #{tpu_custom_call.1} parent=1 // pred_check_branch
      %24 = sbr.rel (0) target = $region9
    $region8: #{tpu_custom_call.1} parent=1 // pred_region
      %26 = vsyncadd [#allocation8], 0
      %s27 = sshll.u32 %s1, 4
      %s28 = int_to_ptr.hbm [resolvable:$true] %s27
      %s29 = sshll.u32 [#allocation7], 4
      %s30 = int_to_ptr.vmem [resolvable:$true] %s29
      %35 = dma.hbm_to_vmem [thread:$0]  %s28, 1024, %s30, [#allocation8], 64, 64, 4
    $region9: #{tpu_custom_call.1} parent=1 // pred_fallthru
      _
    // Predicated region
    $region10: #{tpu_custom_call.1} parent=1 // pred_check
      _
    $region11: #{tpu_custom_call.1} parent=1 // pred_check_branch
      %37 = sbr.rel (0) target = $region13
    $region12: #{tpu_custom_call.1} parent=1 // pred_region
      %39 = dma.done [#allocation5], 2048
    $region13: #{tpu_custom_call.1} parent=1 // pred_fallthru
      _
    // Predicated region
    $region14: #{tpu_custom_call.1} parent=1 // pred_check
      _
    $region15: #{tpu_custom_call.1} parent=1 // pred_check_branch
      %41 = sbr.rel (0) target = $region17
    $region16: #{tpu_custom_call.1} parent=1 // pred_region
      %43 = dma.done [#allocation8], 1024
    $region17: #{tpu_custom_call.1} parent=1 // pred_fallthru
      _
    %p44 = scmp.eq.s32.totalorder 0, 0
    // Predicated region
    $region18: #{tpu_custom_call.1} parent=1 // pred_check
      %p45 = pneg %p44
    $region19: #{tpu_custom_call.1} parent=1 // pred_check_branch
      %47 = sbr.rel (%p45) target = $region21
    $region20: #{tpu_custom_call.1} parent=1 // pred_region
      %48 = vst [vmem:[#allocation2] sm:$0xff] 0.0
      %vm49 = vcmask 130048
      %50 = vst.msk [vmem:[#allocation3] sm:$0xff] %vm49, 0.0
    $region21: #{tpu_custom_call.1} parent=1 // pred_fallthru
      _
    %v51 = vld [vmem:[#allocation7] sm:$0xf]
    %v52 = vld [vmem:[#allocation7 + $0x4] sm:$0xf]
    %v53 = vld [vmem:[#allocation7 + $0x8] sm:$0xf]
    %v54 = vld [vmem:[#allocation7 + $0xc] sm:$0xf]
    %v55 = vld [vmem:[#allocation7 + $0x10] sm:$0xf]
    %v56 = vld [vmem:[#allocation7 + $0x14] sm:$0xf]
    %v57 = vld [vmem:[#allocation7 + $0x18] sm:$0xf]
    %v58 = vld [vmem:[#allocation7 + $0x1c] sm:$0xf]
    %v59 = vld [vmem:[#allocation7 + $0x20] sm:$0xf]
    %v60 = vld [vmem:[#allocation7 + $0x24] sm:$0xf]
    %v61 = vld [vmem:[#allocation7 + $0x28] sm:$0xf]
    %v62 = vld [vmem:[#allocation7 + $0x2c] sm:$0xf]
    %v63 = vld [vmem:[#allocation7 + $0x30] sm:$0xf]
    %v64 = vld [vmem:[#allocation7 + $0x34] sm:$0xf]
    %v65 = vld [vmem:[#allocation7 + $0x38] sm:$0xf]
    %v66 = vld [vmem:[#allocation7 + $0x3c] sm:$0xf]
    %v67 = vlaneseq
    %v68 = vand.u32 %v67, 127
    %vm69 = vcmp.lt.s32.totalorder %v68, 0
    %v70 = vsub.s32 0, %v68
    %v71 = vsel %vm69, %v70, %v68
    %v72 = vshrl.u32 %v71, 6
    %v73 = vand.u32 %v71, 63
    %v74 = vsub.s32 0, %v73
    %v75 = vsel %vm69, %v74, %v73
    %vm76 = vcmp.ne.s32.totalorder %v75, 0
    %vm77 = vcmp.lt.s32.totalorder %v75, 0
    %vm78 = vmand %vm77, %vm76
    %v79 = vadd.s32 %v75, 64
    %v80 = vsel %vm78, %v79, %v75
    %vm81 = vcmp.ge.s32.totalorder %v80, 32
    %vm82 = vcmp.lt.s32.totalorder %v80, 48
    %vm83 = vmand %vm81, %vm82
    %v84 = vsel %vm83, 1, 0
    %v85 = vcvt.s32.f32 %v84
    %v86 = vlaneseq
    %v87 = vshrl.u32 %v86, 7
    %vm88 = vcmp.lt.s32.totalorder %v87, 2
    %v89 = vld [vmem:[#allocation4] sm:$0xff]
    %v90 = vld [vmem:[#allocation2] sm:$0xff]
    %v91 = vadd.f32 %v89, %v90
    %v92 = vpack.c.bf16 %v91, %v91
    %v109 = vunpack.c.l.b16 %v51
    %v110 = vunpack.c.l.b16 %v52
    %v111 = vunpack.c.l.b16 %v53
    %v112 = vunpack.c.l.b16 %v54
    %v113 = vunpack.c.l.b16 %v55
    %v114 = vunpack.c.l.b16 %v56
    %v115 = vunpack.c.l.b16 %v57
    %v116 = vunpack.c.l.b16 %v58
    %v117 = vunpack.c.l.b16 %v59
    %v118 = vunpack.c.l.b16 %v60
    %v119 = vunpack.c.l.b16 %v61
    %v120 = vunpack.c.l.b16 %v62
    %v121 = vunpack.c.l.b16 %v63
    %v122 = vunpack.c.l.b16 %v64
    %v123 = vunpack.c.l.b16 %v65
    %v124 = vunpack.c.l.b16 %v66
    %v125 = vpack.c.b16 %v110, %v109
    %v126 = vpack.c.b16 %v112, %v111
    %v127 = vpack.c.b16 %v114, %v113
    %v128 = vpack.c.b16 %v116, %v115
    %v129 = vpack.c.b16 %v118, %v117
    %v130 = vpack.c.b16 %v120, %v119
    %v131 = vpack.c.b16 %v122, %v121
    %v132 = vpack.c.b16 %v124, %v123
    %141 = vmatpush.bf16.msra.mxu0 %v132
    %142 = vmatpush.bf16.msra.mxu0 %v131
    %143 = vmatpush.bf16.msra.mxu0 %v130
    %144 = vmatpush.bf16.msra.mxu0 %v129
    %145 = vmatpush.bf16.msra.mxu0 %v128
    %146 = vmatpush.bf16.msra.mxu0 %v127
    %147 = vmatpush.bf16.msra.mxu0 %v126
    %148 = vmatpush.bf16.msra.mxu0 %v125
    %149 = vmatmul.bf16.gmra.mxu0 %v92
    %v150 = vpop.f32.mrf.mxu0
    %v151 = vadd.f32 0.0, %v150
    %v152 = vpop.f32.mrf.mxu0
    %153 = vdwg.mxu0
    %v154 = vxor.u32 %v151, 2147483648
    %v155 = vmul.f32 %v154, 1.442695
    %v156 = vpow.pop %v155
    %v157 = vadd.f32 %v156, 1.0
    %v158 = vrcp.pop %v157
    %v159 = vmul.f32 %v157, %v158
    %v160 = vsub.f32 1.0, %v159
    %v161 = vmul.f32 %v158, %v160
    %v162 = vadd.f32 %v158, %v161
    %vm163 = vweird.f32 %v157
    %vm164 = vweird.f32 %v158
    %vm165 = vmor %vm163, %vm164
    %v166 = vsel %vm165, %v158, %v162
    %v167 = vand.u32 2147483647, %v157
    %vm168 = vcmp.eq.f32.partialorder %v167, 8.507059e+37
    %v169 = vand.u32 %v157, 2147483648
    %v170 = vor.u32 1.1754944e-38, %v169
    %v171 = vsel %vm168, %v170, %v166
    %v172 = vmul.f32 1.0, %v171
    %v173 = vsub.f32 %v172, 1.0
    %v174 = vmul.f32 %v85, %v173
    %v175 = vadd.f32 %v172, %v174
    %176 = vrot.lane.b32.xlu0 %v175, 64
    %v177 = vpop.permute.xlu0 %176
    %v178 = vsel %vm88, %v175, %v177
    %v179 = vld [vmem:[#allocation3] sm:$0xff]
    %181 = vrot.lane.b32.xlu0 %v179, 16
    %v182 = vpop.permute.xlu0 %181
    %v184 = vmul.f32 %v178, %v182
    %186 = vrot.lane.b32.xlu0 %v178, 96
    %v187 = vpop.permute.xlu0 %186
    %v189 = vmul.f32 %v178, %v187
    %191 = vrot.lane.b32.xlu0 %v189, 16
    %v192 = vpop.permute.xlu0 %191
    %v194 = vadd.f32 %v184, %v192
    %v195 = vtanh.pop %v194
    %197 = vrot.lane.b32.xlu0 %v195, 32
    %v198 = vpop.permute.xlu0 %197
    %v200 = vmul.f32 %v178, %v198
    %202 = vrot.lane.b32.xlu0 %v194, 112
    %v203 = vpop.permute.xlu0 %202
    %vm205 = vcmask 130048
    %206 = vst.msk [vmem:[#allocation3] sm:$0xff] %vm205, %v203
    %208 = vrot.lane.b32.xlu0 %v200, 112
    %v209 = vpop.permute.xlu0 %208
    %vm211 = vcmask 392448
    %212 = vst.msk [vmem:[#allocation2] sm:$0xff] %vm211, %v209
    %s213 = scalar_lea.vmem [#allocation4], 8
    %v214 = vld [vmem:[%s213] sm:$0xff]
    %v215 = vld [vmem:[#allocation2] sm:$0xff]
    %v216 = vadd.f32 %v214, %v215
    %v217 = vpack.c.bf16 %v216, %v216
    %218 = vmatpush.bf16.msra.mxu0 %v132
    %219 = vmatpush.bf16.msra.mxu0 %v131
    %220 = vmatpush.bf16.msra.mxu0 %v130
    %221 = vmatpush.bf16.msra.mxu0 %v129
    %222 = vmatpush.bf16.msra.mxu0 %v128
    %223 = vmatpush.bf16.msra.mxu0 %v127
    %224 = vmatpush.bf16.msra.mxu0 %v126
    %225 = vmatpush.bf16.msra.mxu0 %v125
    %226 = vmatmul.bf16.gmra.mxu0 %v217
    %v227 = vpop.f32.mrf.mxu0
    %v228 = vadd.f32 0.0, %v227
    %v229 = vpop.f32.mrf.mxu0
    %230 = vdwg.mxu0
    %v231 = vxor.u32 %v228, 2147483648
    %v232 = vmul.f32 %v231, 1.442695
    %v233 = vpow.pop %v232
    %v234 = vadd.f32 %v233, 1.0
    %v235 = vrcp.pop %v234
    %v236 = vmul.f32 %v234, %v235
    %v237 = vsub.f32 1.0, %v236
    %v238 = vmul.f32 %v235, %v237
    %v239 = vadd.f32 %v235, %v238
    %vm240 = vweird.f32 %v234
    %vm241 = vweird.f32 %v235
    %vm242 = vmor %vm240, %vm241
    %v243 = vsel %vm242, %v235, %v239
    %v244 = vand.u32 2147483647, %v234
    %vm245 = vcmp.eq.f32.partialorder %v244, 8.507059e+37
    %v246 = vand.u32 %v234, 2147483648
    %v247 = vor.u32 1.1754944e-38, %v246
    %v248 = vsel %vm245, %v247, %v243
    %v249 = vmul.f32 1.0, %v248
    %v250 = vsub.f32 %v249, 1.0
    %v251 = vmul.f32 %v85, %v250
    %v252 = vadd.f32 %v249, %v251
    %253 = vrot.lane.b32.xlu0 %v252, 64
    %v254 = vpop.permute.xlu0 %253
    %v255 = vsel %vm88, %v252, %v254
    %v256 = vld [vmem:[#allocation3] sm:$0xff]
    %258 = vrot.lane.b32.xlu0 %v256, 16
    %v259 = vpop.permute.xlu0 %258
    %v261 = vmul.f32 %v255, %v259
    %263 = vrot.lane.b32.xlu0 %v255, 96
    %v264 = vpop.permute.xlu0 %263
    %v266 = vmul.f32 %v255, %v264
    %268 = vrot.lane.b32.xlu0 %v266, 16
    %v269 = vpop.permute.xlu0 %268
    %v271 = vadd.f32 %v261, %v269
    %v272 = vtanh.pop %v271
    %274 = vrot.lane.b32.xlu0 %v272, 32
    %v275 = vpop.permute.xlu0 %274
    %v277 = vmul.f32 %v255, %v275
    %279 = vrot.lane.b32.xlu0 %v271, 112
    %v280 = vpop.permute.xlu0 %279
    %282 = vst.msk [vmem:[#allocation3] sm:$0xff] %vm205, %v280
    %284 = vrot.lane.b32.xlu0 %v277, 112
    %v285 = vpop.permute.xlu0 %284
    %287 = vst.msk [vmem:[#allocation2] sm:$0xff] %vm211, %v285
    %s288 = scalar_lea.vmem [#allocation4], 16
    %v289 = vld [vmem:[%s288] sm:$0xff]
    %v290 = vld [vmem:[#allocation2] sm:$0xff]
    %v291 = vadd.f32 %v289, %v290
    %v292 = vpack.c.bf16 %v291, %v291
    %293 = vmatpush.bf16.msra.mxu0 %v132
    %294 = vmatpush.bf16.msra.mxu0 %v131
    %295 = vmatpush.bf16.msra.mxu0 %v130
    %296 = vmatpush.bf16.msra.mxu0 %v129
    %297 = vmatpush.bf16.msra.mxu0 %v128
    %298 = vmatpush.bf16.msra.mxu0 %v127
    %299 = vmatpush.bf16.msra.mxu0 %v126
    %300 = vmatpush.bf16.msra.mxu0 %v125
    %301 = vmatmul.bf16.gmra.mxu0 %v292
    %v302 = vpop.f32.mrf.mxu0
    %v303 = vadd.f32 0.0, %v302
    %v304 = vpop.f32.mrf.mxu0
    %305 = vdwg.mxu0
    %v306 = vxor.u32 %v303, 2147483648
    %v307 = vmul.f32 %v306, 1.442695
    %v308 = vpow.pop %v307
    %v309 = vadd.f32 %v308, 1.0
    %v310 = vrcp.pop %v309
    %v311 = vmul.f32 %v309, %v310
    %v312 = vsub.f32 1.0, %v311
    %v313 = vmul.f32 %v310, %v312
    %v314 = vadd.f32 %v310, %v313
    %vm315 = vweird.f32 %v309
    %vm316 = vweird.f32 %v310
    %vm317 = vmor %vm315, %vm316
    %v318 = vsel %vm317, %v310, %v314
    %v319 = vand.u32 2147483647, %v309
    %vm320 = vcmp.eq.f32.partialorder %v319, 8.507059e+37
    %v321 = vand.u32 %v309, 2147483648
    %v322 = vor.u32 1.1754944e-38, %v321
    %v323 = vsel %vm320, %v322, %v318
    %v324 = vmul.f32 1.0, %v323
    %v325 = vsub.f32 %v324, 1.0
    %v326 = vmul.f32 %v85, %v325
    %v327 = vadd.f32 %v324, %v326
    %328 = vrot.lane.b32.xlu0 %v327, 64
    %v329 = vpop.permute.xlu0 %328
    %v330 = vsel %vm88, %v327, %v329
    %v331 = vld [vmem:[#allocation3] sm:$0xff]
    %333 = vrot.lane.b32.xlu0 %v331, 16
    %v334 = vpop.permute.xlu0 %333
    %v336 = vmul.f32 %v330, %v334
    %338 = vrot.lane.b32.xlu0 %v330, 96
    %v339 = vpop.permute.xlu0 %338
    %v341 = vmul.f32 %v330, %v339
    %343 = vrot.lane.b32.xlu0 %v341, 16
    %v344 = vpop.permute.xlu0 %343
    %v346 = vadd.f32 %v336, %v344
    %v347 = vtanh.pop %v346
    %349 = vrot.lane.b32.xlu0 %v347, 32
    %v350 = vpop.permute.xlu0 %349
    %v352 = vmul.f32 %v330, %v350
    %354 = vrot.lane.b32.xlu0 %v346, 112
    %v355 = vpop.permute.xlu0 %354
    %357 = vst.msk [vmem:[#allocation3] sm:$0xff] %vm205, %v355
    %359 = vrot.lane.b32.xlu0 %v352, 112
    %v360 = vpop.permute.xlu0 %359
    %362 = vst.msk [vmem:[#allocation2] sm:$0xff] %vm211, %v360
    %s363 = scalar_lea.vmem [#allocation4], 24
    %v364 = vld [vmem:[%s363] sm:$0xff]
    %v365 = vld [vmem:[#allocation2] sm:$0xff]
    %v366 = vadd.f32 %v364, %v365
    %v367 = vpack.c.bf16 %v366, %v366
    %368 = vmatpush.bf16.msra.mxu0 %v132
    %369 = vmatpush.bf16.msra.mxu0 %v131
    %370 = vmatpush.bf16.msra.mxu0 %v130
    %371 = vmatpush.bf16.msra.mxu0 %v129
    %372 = vmatpush.bf16.msra.mxu0 %v128
    %373 = vmatpush.bf16.msra.mxu0 %v127
    %374 = vmatpush.bf16.msra.mxu0 %v126
    %375 = vmatpush.bf16.msra.mxu0 %v125
    %376 = vmatmul.bf16.gmra.mxu0 %v367
    %v377 = vpop.f32.mrf.mxu0
    %v378 = vadd.f32 0.0, %v377
    %v379 = vpop.f32.mrf.mxu0
    %380 = vdwg.mxu0
    %v381 = vxor.u32 %v378, 2147483648
    %v382 = vmul.f32 %v381, 1.442695
    %v383 = vpow.pop %v382
    %v384 = vadd.f32 %v383, 1.0
    %v385 = vrcp.pop %v384
    %v386 = vmul.f32 %v384, %v385
    %v387 = vsub.f32 1.0, %v386
    %v388 = vmul.f32 %v385, %v387
    %v389 = vadd.f32 %v385, %v388
    %vm390 = vweird.f32 %v384
    %vm391 = vweird.f32 %v385
    %vm392 = vmor %vm390, %vm391
    %v393 = vsel %vm392, %v385, %v389
    %v394 = vand.u32 2147483647, %v384
    %vm395 = vcmp.eq.f32.partialorder %v394, 8.507059e+37
    %v396 = vand.u32 %v384, 2147483648
    %v397 = vor.u32 1.1754944e-38, %v396
    %v398 = vsel %vm395, %v397, %v393
    %v399 = vmul.f32 1.0, %v398
    %v400 = vsub.f32 %v399, 1.0
    %v401 = vmul.f32 %v85, %v400
    %v402 = vadd.f32 %v399, %v401
    %403 = vrot.lane.b32.xlu0 %v402, 64
    %v404 = vpop.permute.xlu0 %403
    %v405 = vsel %vm88, %v402, %v404
    %v406 = vld [vmem:[#allocation3] sm:$0xff]
    %408 = vrot.lane.b32.xlu0 %v406, 16
    %v409 = vpop.permute.xlu0 %408
    %v411 = vmul.f32 %v405, %v409
    %413 = vrot.lane.b32.xlu0 %v405, 96
    %v414 = vpop.permute.xlu0 %413
    %v416 = vmul.f32 %v405, %v414
    %418 = vrot.lane.b32.xlu0 %v416, 16
    %v419 = vpop.permute.xlu0 %418
    %v421 = vadd.f32 %v411, %v419
    %v422 = vtanh.pop %v421
    %424 = vrot.lane.b32.xlu0 %v422, 32
    %v425 = vpop.permute.xlu0 %424
    %v427 = vmul.f32 %v405, %v425
    %429 = vrot.lane.b32.xlu0 %v421, 112
    %v430 = vpop.permute.xlu0 %429
    %432 = vst.msk [vmem:[#allocation3] sm:$0xff] %vm205, %v430
    %434 = vrot.lane.b32.xlu0 %v427, 112
    %v435 = vpop.permute.xlu0 %434
    %437 = vst.msk [vmem:[#allocation2] sm:$0xff] %vm211, %v435
    %s438 = scalar_lea.vmem [#allocation4], 32
    %v439 = vld [vmem:[%s438] sm:$0xff]
    %v440 = vld [vmem:[#allocation2] sm:$0xff]
    %v441 = vadd.f32 %v439, %v440
    %v442 = vpack.c.bf16 %v441, %v441
    %443 = vmatpush.bf16.msra.mxu0 %v132
    %444 = vmatpush.bf16.msra.mxu0 %v131
    %445 = vmatpush.bf16.msra.mxu0 %v130
    %446 = vmatpush.bf16.msra.mxu0 %v129
    %447 = vmatpush.bf16.msra.mxu0 %v128
    %448 = vmatpush.bf16.msra.mxu0 %v127
    %449 = vmatpush.bf16.msra.mxu0 %v126
    %450 = vmatpush.bf16.msra.mxu0 %v125
    %451 = vmatmul.bf16.gmra.mxu0 %v442
    %v452 = vpop.f32.mrf.mxu0
    %v453 = vadd.f32 0.0, %v452
    %v454 = vpop.f32.mrf.mxu0
    %455 = vdwg.mxu0
    %v456 = vxor.u32 %v453, 2147483648
    %v457 = vmul.f32 %v456, 1.442695
    %v458 = vpow.pop %v457
    %v459 = vadd.f32 %v458, 1.0
    %v460 = vrcp.pop %v459
    %v461 = vmul.f32 %v459, %v460
    %v462 = vsub.f32 1.0, %v461
    %v463 = vmul.f32 %v460, %v462
    %v464 = vadd.f32 %v460, %v463
    %vm465 = vweird.f32 %v459
    %vm466 = vweird.f32 %v460
    %vm467 = vmor %vm465, %vm466
    %v468 = vsel %vm467, %v460, %v464
    %v469 = vand.u32 2147483647, %v459
    %vm470 = vcmp.eq.f32.partialorder %v469, 8.507059e+37
    %v471 = vand.u32 %v459, 2147483648
    %v472 = vor.u32 1.1754944e-38, %v471
    %v473 = vsel %vm470, %v472, %v468
    %v474 = vmul.f32 1.0, %v473
    %v475 = vsub.f32 %v474, 1.0
    %v476 = vmul.f32 %v85, %v475
    %v477 = vadd.f32 %v474, %v476
    %478 = vrot.lane.b32.xlu0 %v477, 64
    %v479 = vpop.permute.xlu0 %478
    %v480 = vsel %vm88, %v477, %v479
    %v481 = vld [vmem:[#allocation3] sm:$0xff]
    %483 = vrot.lane.b32.xlu0 %v481, 16
    %v484 = vpop.permute.xlu0 %483
    %v486 = vmul.f32 %v480, %v484
    %488 = vrot.lane.b32.xlu0 %v480, 96
    %v489 = vpop.permute.xlu0 %488
    %v491 = vmul.f32 %v480, %v489
    %493 = vrot.lane.b32.xlu0 %v491, 16
    %v494 = vpop.permute.xlu0 %493
    %v496 = vadd.f32 %v486, %v494
    %v497 = vtanh.pop %v496
    %499 = vrot.lane.b32.xlu0 %v497, 32
    %v500 = vpop.permute.xlu0 %499
    %v502 = vmul.f32 %v480, %v500
    %504 = vrot.lane.b32.xlu0 %v496, 112
    %v505 = vpop.permute.xlu0 %504
    %507 = vst.msk [vmem:[#allocation3] sm:$0xff] %vm205, %v505
    %509 = vrot.lane.b32.xlu0 %v502, 112
    %v510 = vpop.permute.xlu0 %509
    %512 = vst.msk [vmem:[#allocation2] sm:$0xff] %vm211, %v510
    %s513 = scalar_lea.vmem [#allocation4], 40
    %v514 = vld [vmem:[%s513] sm:$0xff]
    %v515 = vld [vmem:[#allocation2] sm:$0xff]
    %v516 = vadd.f32 %v514, %v515
    %v517 = vpack.c.bf16 %v516, %v516
    %518 = vmatpush.bf16.msra.mxu0 %v132
    %519 = vmatpush.bf16.msra.mxu0 %v131
    %520 = vmatpush.bf16.msra.mxu0 %v130
    %521 = vmatpush.bf16.msra.mxu0 %v129
    %522 = vmatpush.bf16.msra.mxu0 %v128
    %523 = vmatpush.bf16.msra.mxu0 %v127
    %524 = vmatpush.bf16.msra.mxu0 %v126
    %525 = vmatpush.bf16.msra.mxu0 %v125
    %526 = vmatmul.bf16.gmra.mxu0 %v517
    %v527 = vpop.f32.mrf.mxu0
    %v528 = vadd.f32 0.0, %v527
    %v529 = vpop.f32.mrf.mxu0
    %530 = vdwg.mxu0
    %v531 = vxor.u32 %v528, 2147483648
    %v532 = vmul.f32 %v531, 1.442695
    %v533 = vpow.pop %v532
    %v534 = vadd.f32 %v533, 1.0
    %v535 = vrcp.pop %v534
    %v536 = vmul.f32 %v534, %v535
    %v537 = vsub.f32 1.0, %v536
    %v538 = vmul.f32 %v535, %v537
    %v539 = vadd.f32 %v535, %v538
    %vm540 = vweird.f32 %v534
    %vm541 = vweird.f32 %v535
    %vm542 = vmor %vm540, %vm541
    %v543 = vsel %vm542, %v535, %v539
    %v544 = vand.u32 2147483647, %v534
    %vm545 = vcmp.eq.f32.partialorder %v544, 8.507059e+37
    %v546 = vand.u32 %v534, 2147483648
    %v547 = vor.u32 1.1754944e-38, %v546
    %v548 = vsel %vm545, %v547, %v543
    %v549 = vmul.f32 1.0, %v548
    %v550 = vsub.f32 %v549, 1.0
    %v551 = vmul.f32 %v85, %v550
    %v552 = vadd.f32 %v549, %v551
    %553 = vrot.lane.b32.xlu0 %v552, 64
    %v554 = vpop.permute.xlu0 %553
    %v555 = vsel %vm88, %v552, %v554
    %v556 = vld [vmem:[#allocation3] sm:$0xff]
    %558 = vrot.lane.b32.xlu0 %v556, 16
    %v559 = vpop.permute.xlu0 %558
    %v561 = vmul.f32 %v555, %v559
    %563 = vrot.lane.b32.xlu0 %v555, 96
    %v564 = vpop.permute.xlu0 %563
    %v566 = vmul.f32 %v555, %v564
    %568 = vrot.lane.b32.xlu0 %v566, 16
    %v569 = vpop.permute.xlu0 %568
    %v571 = vadd.f32 %v561, %v569
    %v572 = vtanh.pop %v571
    %574 = vrot.lane.b32.xlu0 %v572, 32
    %v575 = vpop.permute.xlu0 %574
    %v577 = vmul.f32 %v555, %v575
    %579 = vrot.lane.b32.xlu0 %v571, 112
    %v580 = vpop.permute.xlu0 %579
    %582 = vst.msk [vmem:[#allocation3] sm:$0xff] %vm205, %v580
    %584 = vrot.lane.b32.xlu0 %v577, 112
    %v585 = vpop.permute.xlu0 %584
    %587 = vst.msk [vmem:[#allocation2] sm:$0xff] %vm211, %v585
    %s588 = scalar_lea.vmem [#allocation4], 48
    %v589 = vld [vmem:[%s588] sm:$0xff]
    %v590 = vld [vmem:[#allocation2] sm:$0xff]
    %v591 = vadd.f32 %v589, %v590
    %v592 = vpack.c.bf16 %v591, %v591
    %593 = vmatpush.bf16.msra.mxu0 %v132
    %594 = vmatpush.bf16.msra.mxu0 %v131
    %595 = vmatpush.bf16.msra.mxu0 %v130
    %596 = vmatpush.bf16.msra.mxu0 %v129
    %597 = vmatpush.bf16.msra.mxu0 %v128
    %598 = vmatpush.bf16.msra.mxu0 %v127
    %599 = vmatpush.bf16.msra.mxu0 %v126
    %600 = vmatpush.bf16.msra.mxu0 %v125
    %601 = vmatmul.bf16.gmra.mxu0 %v592
    %v602 = vpop.f32.mrf.mxu0
    %v603 = vadd.f32 0.0, %v602
    %v604 = vpop.f32.mrf.mxu0
    %605 = vdwg.mxu0
    %v606 = vxor.u32 %v603, 2147483648
    %v607 = vmul.f32 %v606, 1.442695
    %v608 = vpow.pop %v607
    %v609 = vadd.f32 %v608, 1.0
    %v610 = vrcp.pop %v609
    %v611 = vmul.f32 %v609, %v610
    %v612 = vsub.f32 1.0, %v611
    %v613 = vmul.f32 %v610, %v612
    %v614 = vadd.f32 %v610, %v613
    %vm615 = vweird.f32 %v609
    %vm616 = vweird.f32 %v610
    %vm617 = vmor %vm615, %vm616
    %v618 = vsel %vm617, %v610, %v614
    %v619 = vand.u32 2147483647, %v609
    %vm620 = vcmp.eq.f32.partialorder %v619, 8.507059e+37
    %v621 = vand.u32 %v609, 2147483648
    %v622 = vor.u32 1.1754944e-38, %v621
    %v623 = vsel %vm620, %v622, %v618
    %v624 = vmul.f32 1.0, %v623
    %v625 = vsub.f32 %v624, 1.0
    %v626 = vmul.f32 %v85, %v625
    %v627 = vadd.f32 %v624, %v626
    %628 = vrot.lane.b32.xlu0 %v627, 64
    %v629 = vpop.permute.xlu0 %628
    %v630 = vsel %vm88, %v627, %v629
    %v631 = vld [vmem:[#allocation3] sm:$0xff]
    %633 = vrot.lane.b32.xlu0 %v631, 16
    %v634 = vpop.permute.xlu0 %633
    %v636 = vmul.f32 %v630, %v634
    %638 = vrot.lane.b32.xlu0 %v630, 96
    %v639 = vpop.permute.xlu0 %638
    %v641 = vmul.f32 %v630, %v639
    %643 = vrot.lane.b32.xlu0 %v641, 16
    %v644 = vpop.permute.xlu0 %643
    %v646 = vadd.f32 %v636, %v644
    %v647 = vtanh.pop %v646
    %649 = vrot.lane.b32.xlu0 %v647, 32
    %v650 = vpop.permute.xlu0 %649
    %v652 = vmul.f32 %v630, %v650
    %654 = vrot.lane.b32.xlu0 %v646, 112
    %v655 = vpop.permute.xlu0 %654
    %657 = vst.msk [vmem:[#allocation3] sm:$0xff] %vm205, %v655
    %659 = vrot.lane.b32.xlu0 %v652, 112
    %v660 = vpop.permute.xlu0 %659
    %662 = vst.msk [vmem:[#allocation2] sm:$0xff] %vm211, %v660
    %s663 = scalar_lea.vmem [#allocation4], 56
    %v664 = vld [vmem:[%s663] sm:$0xff]
    %v665 = vld [vmem:[#allocation2] sm:$0xff]
    %v666 = vadd.f32 %v664, %v665
    %v667 = vpack.c.bf16 %v666, %v666
    %668 = vmatpush.bf16.msra.mxu0 %v132
    %669 = vmatpush.bf16.msra.mxu0 %v131
    %670 = vmatpush.bf16.msra.mxu0 %v130
    %671 = vmatpush.bf16.msra.mxu0 %v129
    %672 = vmatpush.bf16.msra.mxu0 %v128
    %673 = vmatpush.bf16.msra.mxu0 %v127
    %674 = vmatpush.bf16.msra.mxu0 %v126
    %675 = vmatpush.bf16.msra.mxu0 %v125
    %676 = vmatmul.bf16.gmra.mxu0 %v667
    %v677 = vpop.f32.mrf.mxu0
    %v678 = vadd.f32 0.0, %v677
    %v679 = vpop.f32.mrf.mxu0
    %680 = vdwg.mxu0
    %v681 = vxor.u32 %v678, 2147483648
    %v682 = vmul.f32 %v681, 1.442695
    %v683 = vpow.pop %v682
    %v684 = vadd.f32 %v683, 1.0
    %v685 = vrcp.pop %v684
    %v686 = vmul.f32 %v684, %v685
    %v687 = vsub.f32 1.0, %v686
    %v688 = vmul.f32 %v685, %v687
    %v689 = vadd.f32 %v685, %v688
    %vm690 = vweird.f32 %v684
    %vm691 = vweird.f32 %v685
    %vm692 = vmor %vm690, %vm691
    %v693 = vsel %vm692, %v685, %v689
    %v694 = vand.u32 2147483647, %v684
    %vm695 = vcmp.eq.f32.partialorder %v694, 8.507059e+37
    %v696 = vand.u32 %v684, 2147483648
    %v697 = vor.u32 1.1754944e-38, %v696
    %v698 = vsel %vm695, %v697, %v693
    %v699 = vmul.f32 1.0, %v698
    %v700 = vsub.f32 %v699, 1.0
    %v701 = vmul.f32 %v85, %v700
    %v702 = vadd.f32 %v699, %v701
    %703 = vrot.lane.b32.xlu0 %v702, 64
    %v704 = vpop.permute.xlu0 %703
    %v705 = vsel %vm88, %v702, %v704
    %v706 = vld [vmem:[#allocation3] sm:$0xff]
    %708 = vrot.lane.b32.xlu0 %v706, 16
    %v709 = vpop.permute.xlu0 %708
    %v711 = vmul.f32 %v705, %v709
    %713 = vrot.lane.b32.xlu0 %v705, 96
    %v714 = vpop.permute.xlu0 %713
    %v716 = vmul.f32 %v705, %v714
    %718 = vrot.lane.b32.xlu0 %v716, 16
    %v719 = vpop.permute.xlu0 %718
    %v721 = vadd.f32 %v711, %v719
    %v722 = vtanh.pop %v721
    %724 = vrot.lane.b32.xlu0 %v722, 32
    %v725 = vpop.permute.xlu0 %724
    %v727 = vmul.f32 %v705, %v725
    %729 = vrot.lane.b32.xlu0 %v721, 112
    %v730 = vpop.permute.xlu0 %729
    %732 = vst.msk [vmem:[#allocation3] sm:$0xff] %vm205, %v730
    %734 = vrot.lane.b32.xlu0 %v727, 112
    %v735 = vpop.permute.xlu0 %734
    %737 = vst.msk [vmem:[#allocation2] sm:$0xff] %vm211, %v735
    %738 = vrot.lane.b32.xlu0 %v200, 80
    %v739 = vpop.permute.xlu0 %738
    %741 = vrot.lane.b32.xlu0 %v277, 96
    %v742 = vpop.permute.xlu0 %741
    %744 = vrot.lane.b32.xlu0 %v502, 16
    %v745 = vpop.permute.xlu0 %744
    %747 = vrot.lane.b32.xlu0 %v577, 32
    %v748 = vpop.permute.xlu0 %747
    %750 = vrot.lane.b32.xlu0 %v652, 48
    %v751 = vpop.permute.xlu0 %750
    %753 = vrot.lane.b32.xlu0 %v727, 64
    %v754 = vpop.permute.xlu0 %753
    %v756 = vsel %vm205, %v739, %v742
    %vm757 = vcmask 261120
    %v758 = vsel %vm757, %v756, %v360
    %vm759 = vcmask 392192
    %v760 = vsel %vm759, %v758, %v427
    %vm761 = vcmask 523264
    %v762 = vsel %vm761, %v760, %v745
    %vm763 = vcmask 654336
    %v764 = vsel %vm763, %v762, %v748
    %vm765 = vcmask 785408
    %v766 = vsel %vm765, %v764, %v751
    %vm767 = vcmask 916480
    %v768 = vsel %vm767, %v766, %v754
    %769 = vst [vmem:[#allocation9] sm:$0xff] %v768
    %s770 = scalar_lea.vmem [#allocation4], 64
    %v771 = vld [vmem:[%s770] sm:$0xff]
    %v772 = vld [vmem:[#allocation2] sm:$0xff]
    %v773 = vadd.f32 %v771, %v772
    %v774 = vpack.c.bf16 %v773, %v773
    %775 = vmatpush.bf16.msra.mxu0 %v132
    %776 = vmatpush.bf16.msra.mxu0 %v131
    %777 = vmatpush.bf16.msra.mxu0 %v130
    %778 = vmatpush.bf16.msra.mxu0 %v129
    %779 = vmatpush.bf16.msra.mxu0 %v128
    %780 = vmatpush.bf16.msra.mxu0 %v127
    %781 = vmatpush.bf16.msra.mxu0 %v126
    %782 = vmatpush.bf16.msra.mxu0 %v125
    %783 = vmatmul.bf16.gmra.mxu0 %v774
    %v784 = vpop.f32.mrf.mxu0
    %v785 = vadd.f32 0.0, %v784
    %v786 = vpop.f32.mrf.mxu0
    %787 = vdwg.mxu0
    %v788 = vxor.u32 %v785, 2147483648
    %v789 = vmul.f32 %v788, 1.442695
    %v790 = vpow.pop %v789
    %v791 = vadd.f32 %v790, 1.0
    %v792 = vrcp.pop %v791
    %v793 = vmul.f32 %v791, %v792
    %v794 = vsub.f32 1.0, %v793
    %v795 = vmul.f32 %v792, %v794
    %v796 = vadd.f32 %v792, %v795
    %vm797 = vweird.f32 %v791
    %vm798 = vweird.f32 %v792
    %vm799 = vmor %vm797, %vm798
    %v800 = vsel %vm799, %v792, %v796
    %v801 = vand.u32 2147483647, %v791
    %vm802 = vcmp.eq.f32.partialorder %v801, 8.507059e+37
    %v803 = vand.u32 %v791, 2147483648
    %v804 = vor.u32 1.1754944e-38, %v803
    %v805 = vsel %vm802, %v804, %v800
    %v806 = vmul.f32 1.0, %v805
    %v807 = vsub.f32 %v806, 1.0
    %v808 = vmul.f32 %v85, %v807
    %v809 = vadd.f32 %v806, %v808
    %810 = vrot.lane.b32.xlu0 %v809, 64
    %v811 = vpop.permute.xlu0 %810
    %v812 = vsel %vm88, %v809, %v811
    %v813 = vld [vmem:[#allocation3] sm:$0xff]
    %815 = vrot.lane.b32.xlu0 %v813, 16
    %v816 = vpop.permute.xlu0 %815
    %v818 = vmul.f32 %v812, %v816
    %820 = vrot.lane.b32.xlu0 %v812, 96
    %v821 = vpop.permute.xlu0 %820
    %v823 = vmul.f32 %v812, %v821
    %825 = vrot.lane.b32.xlu0 %v823, 16
    %v826 = vpop.permute.xlu0 %825
    %v828 = vadd.f32 %v818, %v826
    %v829 = vtanh.pop %v828
    %831 = vrot.lane.b32.xlu0 %v829, 32
    %v832 = vpop.permute.xlu0 %831
    %v834 = vmul.f32 %v812, %v832
    %836 = vrot.lane.b32.xlu0 %v828, 112
    %v837 = vpop.permute.xlu0 %836
    %839 = vst.msk [vmem:[#allocation3] sm:$0xff] %vm205, %v837
    %841 = vrot.lane.b32.xlu0 %v834, 112
    %v842 = vpop.permute.xlu0 %841
    %844 = vst.msk [vmem:[#allocation2] sm:$0xff] %vm211, %v842
    %s845 = scalar_lea.vmem [#allocation4], 72
    %v846 = vld [vmem:[%s845] sm:$0xff]
    %v847 = vld [vmem:[#allocation2] sm:$0xff]
    %v848 = vadd.f32 %v846, %v847
    %v849 = vpack.c.bf16 %v848, %v848
    %850 = vmatpush.bf16.msra.mxu0 %v132
    %851 = vmatpush.bf16.msra.mxu0 %v131
    %852 = vmatpush.bf16.msra.mxu0 %v130
    %853 = vmatpush.bf16.msra.mxu0 %v129
    %854 = vmatpush.bf16.msra.mxu0 %v128
    %855 = vmatpush.bf16.msra.mxu0 %v127
    %856 = vmatpush.bf16.msra.mxu0 %v126
    %857 = vmatpush.bf16.msra.mxu0 %v125
    %858 = vmatmul.bf16.gmra.mxu0 %v849
    %v859 = vpop.f32.mrf.mxu0
    %v860 = vadd.f32 0.0, %v859
    %v861 = vpop.f32.mrf.mxu0
    %862 = vdwg.mxu0
    %v863 = vxor.u32 %v860, 2147483648
    %v864 = vmul.f32 %v863, 1.442695
    %v865 = vpow.pop %v864
    %v866 = vadd.f32 %v865, 1.0
    %v867 = vrcp.pop %v866
    %v868 = vmul.f32 %v866, %v867
    %v869 = vsub.f32 1.0, %v868
    %v870 = vmul.f32 %v867, %v869
    %v871 = vadd.f32 %v867, %v870
    %vm872 = vweird.f32 %v866
    %vm873 = vweird.f32 %v867
    %vm874 = vmor %vm872, %vm873
    %v875 = vsel %vm874, %v867, %v871
    %v876 = vand.u32 2147483647, %v866
    %vm877 = vcmp.eq.f32.partialorder %v876, 8.507059e+37
    %v878 = vand.u32 %v866, 2147483648
    %v879 = vor.u32 1.1754944e-38, %v878
    %v880 = vsel %vm877, %v879, %v875
    %v881 = vmul.f32 1.0, %v880
    %v882 = vsub.f32 %v881, 1.0
    %v883 = vmul.f32 %v85, %v882
    %v884 = vadd.f32 %v881, %v883
    %885 = vrot.lane.b32.xlu0 %v884, 64
    %v886 = vpop.permute.xlu0 %885
    %v887 = vsel %vm88, %v884, %v886
    %v888 = vld [vmem:[#allocation3] sm:$0xff]
    %890 = vrot.lane.b32.xlu0 %v888, 16
    %v891 = vpop.permute.xlu0 %890
    %v893 = vmul.f32 %v887, %v891
    %895 = vrot.lane.b32.xlu0 %v887, 96
    %v896 = vpop.permute.xlu0 %895
    %v898 = vmul.f32 %v887, %v896
    %900 = vrot.lane.b32.xlu0 %v898, 16
    %v901 = vpop.permute.xlu0 %900
    %v903 = vadd.f32 %v893, %v901
    %v904 = vtanh.pop %v903
    %906 = vrot.lane.b32.xlu0 %v904, 32
    %v907 = vpop.permute.xlu0 %906
    %v909 = vmul.f32 %v887, %v907
    %911 = vrot.lane.b32.xlu0 %v903, 112
    %v912 = vpop.permute.xlu0 %911
    %914 = vst.msk [vmem:[#allocation3] sm:$0xff] %vm205, %v912
    %916 = vrot.lane.b32.xlu0 %v909, 112
    %v917 = vpop.permute.xlu0 %916
    %919 = vst.msk [vmem:[#allocation2] sm:$0xff] %vm211, %v917
    %s920 = scalar_lea.vmem [#allocation4], 80
    %v921 = vld [vmem:[%s920] sm:$0xff]
    %v922 = vld [vmem:[#allocation2] sm:$0xff]
    %v923 = vadd.f32 %v921, %v922
    %v924 = vpack.c.bf16 %v923, %v923
    %925 = vmatpush.bf16.msra.mxu0 %v132
    %926 = vmatpush.bf16.msra.mxu0 %v131
    %927 = vmatpush.bf16.msra.mxu0 %v130
    %928 = vmatpush.bf16.msra.mxu0 %v129
    %929 = vmatpush.bf16.msra.mxu0 %v128
    %930 = vmatpush.bf16.msra.mxu0 %v127
    %931 = vmatpush.bf16.msra.mxu0 %v126
    %932 = vmatpush.bf16.msra.mxu0 %v125
    %933 = vmatmul.bf16.gmra.mxu0 %v924
    %v934 = vpop.f32.mrf.mxu0
    %v935 = vadd.f32 0.0, %v934
    %v936 = vpop.f32.mrf.mxu0
    %937 = vdwg.mxu0
    %v938 = vxor.u32 %v935, 2147483648
    %v939 = vmul.f32 %v938, 1.442695
    %v940 = vpow.pop %v939
    %v941 = vadd.f32 %v940, 1.0
    %v942 = vrcp.pop %v941
    %v943 = vmul.f32 %v941, %v942
    %v944 = vsub.f32 1.0, %v943
    %v945 = vmul.f32 %v942, %v944
    %v946 = vadd.f32 %v942, %v945
    %vm947 = vweird.f32 %v941
    %vm948 = vweird.f32 %v942
    %vm949 = vmor %vm947, %vm948
    %v950 = vsel %vm949, %v942, %v946
    %v951 = vand.u32 2147483647, %v941
    %vm952 = vcmp.eq.f32.partialorder %v951, 8.507059e+37
    %v953 = vand.u32 %v941, 2147483648
    %v954 = vor.u32 1.1754944e-38, %v953
    %v955 = vsel %vm952, %v954, %v950
    %v956 = vmul.f32 1.0, %v955
    %v957 = vsub.f32 %v956, 1.0
    %v958 = vmul.f32 %v85, %v957
    %v959 = vadd.f32 %v956, %v958
    %960 = vrot.lane.b32.xlu0 %v959, 64
    %v961 = vpop.permute.xlu0 %960
    %v962 = vsel %vm88, %v959, %v961
    %v963 = vld [vmem:[#allocation3] sm:$0xff]
    %965 = vrot.lane.b32.xlu0 %v963, 16
    %v966 = vpop.permute.xlu0 %965
    %v968 = vmul.f32 %v962, %v966
    %970 = vrot.lane.b32.xlu0 %v962, 96
    %v971 = vpop.permute.xlu0 %970
    %v973 = vmul.f32 %v962, %v971
    %975 = vrot.lane.b32.xlu0 %v973, 16
    %v976 = vpop.permute.xlu0 %975
    %v978 = vadd.f32 %v968, %v976
    %v979 = vtanh.pop %v978
    %981 = vrot.lane.b32.xlu0 %v979, 32
    %v982 = vpop.permute.xlu0 %981
    %v984 = vmul.f32 %v962, %v982
    %986 = vrot.lane.b32.xlu0 %v978, 112
    %v987 = vpop.permute.xlu0 %986
    %989 = vst.msk [vmem:[#allocation3] sm:$0xff] %vm205, %v987
    %991 = vrot.lane.b32.xlu0 %v984, 112
    %v992 = vpop.permute.xlu0 %991
    %994 = vst.msk [vmem:[#allocation2] sm:$0xff] %vm211, %v992
    %s995 = scalar_lea.vmem [#allocation4], 88
    %v996 = vld [vmem:[%s995] sm:$0xff]
    %v997 = vld [vmem:[#allocation2] sm:$0xff]
    %v998 = vadd.f32 %v996, %v997
    %v999 = vpack.c.bf16 %v998, %v998
    %1000 = vmatpush.bf16.msra.mxu0 %v132
    %1001 = vmatpush.bf16.msra.mxu0 %v131
    %1002 = vmatpush.bf16.msra.mxu0 %v130
    %1003 = vmatpush.bf16.msra.mxu0 %v129
    %1004 = vmatpush.bf16.msra.mxu0 %v128
    %1005 = vmatpush.bf16.msra.mxu0 %v127
    %1006 = vmatpush.bf16.msra.mxu0 %v126
    %1007 = vmatpush.bf16.msra.mxu0 %v125
    %1008 = vmatmul.bf16.gmra.mxu0 %v999
    %v1009 = vpop.f32.mrf.mxu0
    %v1010 = vadd.f32 0.0, %v1009
    %v1011 = vpop.f32.mrf.mxu0
    %1012 = vdwg.mxu0
    %v1013 = vxor.u32 %v1010, 2147483648
    %v1014 = vmul.f32 %v1013, 1.442695
    %v1015 = vpow.pop %v1014
    %v1016 = vadd.f32 %v1015, 1.0
    %v1017 = vrcp.pop %v1016
    %v1018 = vmul.f32 %v1016, %v1017
    %v1019 = vsub.f32 1.0, %v1018
    %v1020 = vmul.f32 %v1017, %v1019
    %v1021 = vadd.f32 %v1017, %v1020
    %vm1022 = vweird.f32 %v1016
    %vm1023 = vweird.f32 %v1017
    %vm1024 = vmor %vm1022, %vm1023
    %v1025 = vsel %vm1024, %v1017, %v1021
    %v1026 = vand.u32 2147483647, %v1016
    %vm1027 = vcmp.eq.f32.partialorder %v1026, 8.507059e+37
    %v1028 = vand.u32 %v1016, 2147483648
    %v1029 = vor.u32 1.1754944e-38, %v1028
    %v1030 = vsel %vm1027, %v1029, %v1025
    %v1031 = vmul.f32 1.0, %v1030
    %v1032 = vsub.f32 %v1031, 1.0
    %v1033 = vmul.f32 %v85, %v1032
    %v1034 = vadd.f32 %v1031, %v1033
    %1035 = vrot.lane.b32.xlu0 %v1034, 64
    %v1036 = vpop.permute.xlu0 %1035
    %v1037 = vsel %vm88, %v1034, %v1036
    %v1038 = vld [vmem:[#allocation3] sm:$0xff]
    %1040 = vrot.lane.b32.xlu0 %v1038, 16
    %v1041 = vpop.permute.xlu0 %1040
    %v1043 = vmul.f32 %v1037, %v1041
    %1045 = vrot.lane.b32.xlu0 %v1037, 96
    %v1046 = vpop.permute.xlu0 %1045
    %v1048 = vmul.f32 %v1037, %v1046
    %1050 = vrot.lane.b32.xlu0 %v1048, 16
    %v1051 = vpop.permute.xlu0 %1050
    %v1053 = vadd.f32 %v1043, %v1051
    %v1054 = vtanh.pop %v1053
    %1056 = vrot.lane.b32.xlu0 %v1054, 32
    %v1057 = vpop.permute.xlu0 %1056
    %v1059 = vmul.f32 %v1037, %v1057
    %1061 = vrot.lane.b32.xlu0 %v1053, 112
    %v1062 = vpop.permute.xlu0 %1061
    %1064 = vst.msk [vmem:[#allocation3] sm:$0xff] %vm205, %v1062
    %1066 = vrot.lane.b32.xlu0 %v1059, 112
    %v1067 = vpop.permute.xlu0 %1066
    %1069 = vst.msk [vmem:[#allocation2] sm:$0xff] %vm211, %v1067
    %s1070 = scalar_lea.vmem [#allocation4], 96
    %v1071 = vld [vmem:[%s1070] sm:$0xff]
    %v1072 = vld [vmem:[#allocation2] sm:$0xff]
    %v1073 = vadd.f32 %v1071, %v1072
    %v1074 = vpack.c.bf16 %v1073, %v1073
    %1075 = vmatpush.bf16.msra.mxu0 %v132
    %1076 = vmatpush.bf16.msra.mxu0 %v131
    %1077 = vmatpush.bf16.msra.mxu0 %v130
    %1078 = vmatpush.bf16.msra.mxu0 %v129
    %1079 = vmatpush.bf16.msra.mxu0 %v128
    %1080 = vmatpush.bf16.msra.mxu0 %v127
    %1081 = vmatpush.bf16.msra.mxu0 %v126
    %1082 = vmatpush.bf16.msra.mxu0 %v125
    %1083 = vmatmul.bf16.gmra.mxu0 %v1074
    %v1084 = vpop.f32.mrf.mxu0
    %v1085 = vadd.f32 0.0, %v1084
    %v1086 = vpop.f32.mrf.mxu0
    %1087 = vdwg.mxu0
    %v1088 = vxor.u32 %v1085, 2147483648
    %v1089 = vmul.f32 %v1088, 1.442695
    %v1090 = vpow.pop %v1089
    %v1091 = vadd.f32 %v1090, 1.0
    %v1092 = vrcp.pop %v1091
    %v1093 = vmul.f32 %v1091, %v1092
    %v1094 = vsub.f32 1.0, %v1093
    %v1095 = vmul.f32 %v1092, %v1094
    %v1096 = vadd.f32 %v1092, %v1095
    %vm1097 = vweird.f32 %v1091
    %vm1098 = vweird.f32 %v1092
    %vm1099 = vmor %vm1097, %vm1098
    %v1100 = vsel %vm1099, %v1092, %v1096
    %v1101 = vand.u32 2147483647, %v1091
    %vm1102 = vcmp.eq.f32.partialorder %v1101, 8.507059e+37
    %v1103 = vand.u32 %v1091, 2147483648
    %v1104 = vor.u32 1.1754944e-38, %v1103
    %v1105 = vsel %vm1102, %v1104, %v1100
    %v1106 = vmul.f32 1.0, %v1105
    %v1107 = vsub.f32 %v1106, 1.0
    %v1108 = vmul.f32 %v85, %v1107
    %v1109 = vadd.f32 %v1106, %v1108
    %1110 = vrot.lane.b32.xlu0 %v1109, 64
    %v1111 = vpop.permute.xlu0 %1110
    %v1112 = vsel %vm88, %v1109, %v1111
    %v1113 = vld [vmem:[#allocation3] sm:$0xff]
    %1115 = vrot.lane.b32.xlu0 %v1113, 16
    %v1116 = vpop.permute.xlu0 %1115
    %v1118 = vmul.f32 %v1112, %v1116
    %1120 = vrot.lane.b32.xlu0 %v1112, 96
    %v1121 = vpop.permute.xlu0 %1120
    %v1123 = vmul.f32 %v1112, %v1121
    %1125 = vrot.lane.b32.xlu0 %v1123, 16
    %v1126 = vpop.permute.xlu0 %1125
    %v1128 = vadd.f32 %v1118, %v1126
    %v1129 = vtanh.pop %v1128
    %1131 = vrot.lane.b32.xlu0 %v1129, 32
    %v1132 = vpop.permute.xlu0 %1131
    %v1134 = vmul.f32 %v1112, %v1132
    %1136 = vrot.lane.b32.xlu0 %v1128, 112
    %v1137 = vpop.permute.xlu0 %1136
    %1139 = vst.msk [vmem:[#allocation3] sm:$0xff] %vm205, %v1137
    %1141 = vrot.lane.b32.xlu0 %v1134, 112
    %v1142 = vpop.permute.xlu0 %1141
    %1144 = vst.msk [vmem:[#allocation2] sm:$0xff] %vm211, %v1142
    %s1145 = scalar_lea.vmem [#allocation4], 104
    %v1146 = vld [vmem:[%s1145] sm:$0xff]
    %v1147 = vld [vmem:[#allocation2] sm:$0xff]
    %v1148 = vadd.f32 %v1146, %v1147
    %v1149 = vpack.c.bf16 %v1148, %v1148
    %1150 = vmatpush.bf16.msra.mxu0 %v132
    %1151 = vmatpush.bf16.msra.mxu0 %v131
    %1152 = vmatpush.bf16.msra.mxu0 %v130
    %1153 = vmatpush.bf16.msra.mxu0 %v129
    %1154 = vmatpush.bf16.msra.mxu0 %v128
    %1155 = vmatpush.bf16.msra.mxu0 %v127
    %1156 = vmatpush.bf16.msra.mxu0 %v126
    %1157 = vmatpush.bf16.msra.mxu0 %v125
    %1158 = vmatmul.bf16.gmra.mxu0 %v1149
    %v1159 = vpop.f32.mrf.mxu0
    %v1160 = vadd.f32 0.0, %v1159
    %v1161 = vpop.f32.mrf.mxu0
    %1162 = vdwg.mxu0
    %v1163 = vxor.u32 %v1160, 2147483648
    %v1164 = vmul.f32 %v1163, 1.442695
    %v1165 = vpow.pop %v1164
    %v1166 = vadd.f32 %v1165, 1.0
    %v1167 = vrcp.pop %v1166
    %v1168 = vmul.f32 %v1166, %v1167
    %v1169 = vsub.f32 1.0, %v1168
    %v1170 = vmul.f32 %v1167, %v1169
    %v1171 = vadd.f32 %v1167, %v1170
    %vm1172 = vweird.f32 %v1166
    %vm1173 = vweird.f32 %v1167
    %vm1174 = vmor %vm1172, %vm1173
    %v1175 = vsel %vm1174, %v1167, %v1171
    %v1176 = vand.u32 2147483647, %v1166
    %vm1177 = vcmp.eq.f32.partialorder %v1176, 8.507059e+37
    %v1178 = vand.u32 %v1166, 2147483648
    %v1179 = vor.u32 1.1754944e-38, %v1178
    %v1180 = vsel %vm1177, %v1179, %v1175
    %v1181 = vmul.f32 1.0, %v1180
    %v1182 = vsub.f32 %v1181, 1.0
    %v1183 = vmul.f32 %v85, %v1182
    %v1184 = vadd.f32 %v1181, %v1183
    %1185 = vrot.lane.b32.xlu0 %v1184, 64
    %v1186 = vpop.permute.xlu0 %1185
    %v1187 = vsel %vm88, %v1184, %v1186
    %v1188 = vld [vmem:[#allocation3] sm:$0xff]
    %1190 = vrot.lane.b32.xlu0 %v1188, 16
    %v1191 = vpop.permute.xlu0 %1190
    %v1193 = vmul.f32 %v1187, %v1191
    %1195 = vrot.lane.b32.xlu0 %v1187, 96
    %v1196 = vpop.permute.xlu0 %1195
    %v1198 = vmul.f32 %v1187, %v1196
    %1200 = vrot.lane.b32.xlu0 %v1198, 16
    %v1201 = vpop.permute.xlu0 %1200
    %v1203 = vadd.f32 %v1193, %v1201
    %v1204 = vtanh.pop %v1203
    %1206 = vrot.lane.b32.xlu0 %v1204, 32
    %v1207 = vpop.permute.xlu0 %1206
    %v1209 = vmul.f32 %v1187, %v1207
    %1211 = vrot.lane.b32.xlu0 %v1203, 112
    %v1212 = vpop.permute.xlu0 %1211
    %1214 = vst.msk [vmem:[#allocation3] sm:$0xff] %vm205, %v1212
    %1216 = vrot.lane.b32.xlu0 %v1209, 112
    %v1217 = vpop.permute.xlu0 %1216
    %1219 = vst.msk [vmem:[#allocation2] sm:$0xff] %vm211, %v1217
    %s1220 = scalar_lea.vmem [#allocation4], 112
    %v1221 = vld [vmem:[%s1220] sm:$0xff]
    %v1222 = vld [vmem:[#allocation2] sm:$0xff]
    %v1223 = vadd.f32 %v1221, %v1222
    %v1224 = vpack.c.bf16 %v1223, %v1223
    %1225 = vmatpush.bf16.msra.mxu0 %v132
    %1226 = vmatpush.bf16.msra.mxu0 %v131
    %1227 = vmatpush.bf16.msra.mxu0 %v130
    %1228 = vmatpush.bf16.msra.mxu0 %v129
    %1229 = vmatpush.bf16.msra.mxu0 %v128
    %1230 = vmatpush.bf16.msra.mxu0 %v127
    %1231 = vmatpush.bf16.msra.mxu0 %v126
    %1232 = vmatpush.bf16.msra.mxu0 %v125
    %1233 = vmatmul.bf16.gmra.mxu0 %v1224
    %v1234 = vpop.f32.mrf.mxu0
    %v1235 = vadd.f32 0.0, %v1234
    %v1236 = vpop.f32.mrf.mxu0
    %1237 = vdwg.mxu0
    %v1238 = vxor.u32 %v1235, 2147483648
    %v1239 = vmul.f32 %v1238, 1.442695
    %v1240 = vpow.pop %v1239
    %v1241 = vadd.f32 %v1240, 1.0
    %v1242 = vrcp.pop %v1241
    %v1243 = vmul.f32 %v1241, %v1242
    %v1244 = vsub.f32 1.0, %v1243
    %v1245 = vmul.f32 %v1242, %v1244
    %v1246 = vadd.f32 %v1242, %v1245
    %vm1247 = vweird.f32 %v1241
    %vm1248 = vweird.f32 %v1242
    %vm1249 = vmor %vm1247, %vm1248
    %v1250 = vsel %vm1249, %v1242, %v1246
    %v1251 = vand.u32 2147483647, %v1241
    %vm1252 = vcmp.eq.f32.partialorder %v1251, 8.507059e+37
    %v1253 = vand.u32 %v1241, 2147483648
    %v1254 = vor.u32 1.1754944e-38, %v1253
    %v1255 = vsel %vm1252, %v1254, %v1250
    %v1256 = vmul.f32 1.0, %v1255
    %v1257 = vsub.f32 %v1256, 1.0
    %v1258 = vmul.f32 %v85, %v1257
    %v1259 = vadd.f32 %v1256, %v1258
    %1260 = vrot.lane.b32.xlu0 %v1259, 64
    %v1261 = vpop.permute.xlu0 %1260
    %v1262 = vsel %vm88, %v1259, %v1261
    %v1263 = vld [vmem:[#allocation3] sm:$0xff]
    %1265 = vrot.lane.b32.xlu0 %v1263, 16
    %v1266 = vpop.permute.xlu0 %1265
    %v1268 = vmul.f32 %v1262, %v1266
    %1270 = vrot.lane.b32.xlu0 %v1262, 96
    %v1271 = vpop.permute.xlu0 %1270
    %v1273 = vmul.f32 %v1262, %v1271
    %1275 = vrot.lane.b32.xlu0 %v1273, 16
    %v1276 = vpop.permute.xlu0 %1275
    %v1278 = vadd.f32 %v1268, %v1276
    %v1279 = vtanh.pop %v1278
    %1281 = vrot.lane.b32.xlu0 %v1279, 32
    %v1282 = vpop.permute.xlu0 %1281
    %v1284 = vmul.f32 %v1262, %v1282
    %1286 = vrot.lane.b32.xlu0 %v1278, 112
    %v1287 = vpop.permute.xlu0 %1286
    %1289 = vst.msk [vmem:[#allocation3] sm:$0xff] %vm205, %v1287
    %1291 = vrot.lane.b32.xlu0 %v1284, 112
    %v1292 = vpop.permute.xlu0 %1291
    %1294 = vst.msk [vmem:[#allocation2] sm:$0xff] %vm211, %v1292
    %s1295 = scalar_lea.vmem [#allocation4], 120
    %v1296 = vld [vmem:[%s1295] sm:$0xff]
    %v1297 = vld [vmem:[#allocation2] sm:$0xff]
    %v1298 = vadd.f32 %v1296, %v1297
    %v1299 = vpack.c.bf16 %v1298, %v1298
    %1300 = vmatpush.bf16.msra.mxu0 %v132
    %1301 = vmatpush.bf16.msra.mxu0 %v131
    %1302 = vmatpush.bf16.msra.mxu0 %v130
    %1303 = vmatpush.bf16.msra.mxu0 %v129
    %1304 = vmatpush.bf16.msra.mxu0 %v128
    %1305 = vmatpush.bf16.msra.mxu0 %v127
    %1306 = vmatpush.bf16.msra.mxu0 %v126
    %1307 = vmatpush.bf16.msra.mxu0 %v125
    %1308 = vmatmul.bf16.gmra.mxu0 %v1299
    %v1309 = vpop.f32.mrf.mxu0
    %v1310 = vadd.f32 0.0, %v1309
    %v1311 = vpop.f32.mrf.mxu0
    %1312 = vdwg.mxu0
    %v1313 = vxor.u32 %v1310, 2147483648
    %v1314 = vmul.f32 %v1313, 1.442695
    %v1315 = vpow.pop %v1314
    %v1316 = vadd.f32 %v1315, 1.0
    %v1317 = vrcp.pop %v1316
    %v1318 = vmul.f32 %v1316, %v1317
    %v1319 = vsub.f32 1.0, %v1318
    %v1320 = vmul.f32 %v1317, %v1319
    %v1321 = vadd.f32 %v1317, %v1320
    %vm1322 = vweird.f32 %v1316
    %vm1323 = vweird.f32 %v1317
    %vm1324 = vmor %vm1322, %vm1323
    %v1325 = vsel %vm1324, %v1317, %v1321
    %v1326 = vand.u32 2147483647, %v1316
    %vm1327 = vcmp.eq.f32.partialorder %v1326, 8.507059e+37
    %v1328 = vand.u32 %v1316, 2147483648
    %v1329 = vor.u32 1.1754944e-38, %v1328
    %v1330 = vsel %vm1327, %v1329, %v1325
    %v1331 = vmul.f32 1.0, %v1330
    %v1332 = vsub.f32 %v1331, 1.0
    %v1333 = vmul.f32 %v85, %v1332
    %v1334 = vadd.f32 %v1331, %v1333
    %1335 = vrot.lane.b32.xlu0 %v1334, 64
    %v1336 = vpop.permute.xlu0 %1335
    %v1337 = vsel %vm88, %v1334, %v1336
    %v1338 = vld [vmem:[#allocation3] sm:$0xff]
    %1340 = vrot.lane.b32.xlu0 %v1338, 16
    %v1341 = vpop.permute.xlu0 %1340
    %v1343 = vmul.f32 %v1337, %v1341
    %1345 = vrot.lane.b32.xlu0 %v1337, 96
    %v1346 = vpop.permute.xlu0 %1345
    %v1348 = vmul.f32 %v1337, %v1346
    %1350 = vrot.lane.b32.xlu0 %v1348, 16
    %v1351 = vpop.permute.xlu0 %1350
    %v1353 = vadd.f32 %v1343, %v1351
    %v1354 = vtanh.pop %v1353
    %1356 = vrot.lane.b32.xlu0 %v1354, 32
    %v1357 = vpop.permute.xlu0 %1356
    %v1359 = vmul.f32 %v1337, %v1357
    %1361 = vrot.lane.b32.xlu0 %v1353, 112
    %v1362 = vpop.permute.xlu0 %1361
    %1364 = vst.msk [vmem:[#allocation3] sm:$0xff] %vm205, %v1362
    %1366 = vrot.lane.b32.xlu0 %v1359, 112
    %v1367 = vpop.permute.xlu0 %1366
    %1369 = vst.msk [vmem:[#allocation2] sm:$0xff] %vm211, %v1367
    %1370 = vrot.lane.b32.xlu0 %v834, 80
    %v1371 = vpop.permute.xlu0 %1370
    %1373 = vrot.lane.b32.xlu0 %v909, 96
    %v1374 = vpop.permute.xlu0 %1373
    %1376 = vrot.lane.b32.xlu0 %v1134, 16
    %v1377 = vpop.permute.xlu0 %1376
    %1379 = vrot.lane.b32.xlu0 %v1209, 32
    %v1380 = vpop.permute.xlu0 %1379
    %1382 = vrot.lane.b32.xlu0 %v1284, 48
    %v1383 = vpop.permute.xlu0 %1382
    %1385 = vrot.lane.b32.xlu0 %v1359, 64
    %v1386 = vpop.permute.xlu0 %1385
    %v1388 = vsel %vm205, %v1371, %v1374
    %v1389 = vsel %vm757, %v1388, %v992
    %v1390 = vsel %vm759, %v1389, %v1059
    %v1391 = vsel %vm761, %v1390, %v1377
    %v1392 = vsel %vm763, %v1391, %v1380
    %v1393 = vsel %vm765, %v1392, %v1383
    %v1394 = vsel %vm767, %v1393, %v1386
    %s1395 = scalar_lea.vmem [#allocation9], 8
    %1396 = vst [vmem:[%s1395] sm:$0xff] %v1394
    // Predicated region
    $region22: #{tpu_custom_call.1} parent=1 // pred_check
      _
    $region23: #{tpu_custom_call.1} parent=1 // pred_check_branch
      %1398 = sbr.rel (0) target = $region25
    $region24: #{tpu_custom_call.1} parent=1 // pred_region
      %1400 = vsyncadd [#allocation6], 0
      %s1401 = sshll.u32 [#allocation9], 4
      %s1402 = int_to_ptr.vmem [resolvable:$true] %s1401
      %s1403 = sshll.u32 %s2, 4
      %s1404 = int_to_ptr.hbm [resolvable:$true] %s1403
      %1409 = dma.vmem_to_hbm [thread:$0]  %s1402, 256, %s1404, [#allocation6], 128, 128, 8
    $region25: #{tpu_custom_call.1} parent=1 // pred_fallthru
      _
    // Predicated region
    $region26: #{tpu_custom_call.1} parent=1 // pred_check
      _
    $region27: #{tpu_custom_call.1} parent=1 // pred_check_branch
      %1411 = sbr.rel (0) target = $region29
    $region28: #{tpu_custom_call.1} parent=1 // pred_region
      %1413 = dma.done [#allocation6], 256
    $region29: #{tpu_custom_call.1} parent=1 // pred_fallthru
      _
    %1414 = vsyncpa [#allocation5], 1
    %1415 = vsyncpa [#allocation8], 1
    %1416 = vsyncpa [#allocation6], 1

</llo_original>
